<compile_context>
chip_gen: v7x
topology: tpu7x:2x2x1
jax: 0.10.0
libtpu: 0.0.40
codegen_flags: <defaults>
</compile_context>

<pallas_src>
import numpy as np
import jax
import jax.numpy as jnp
from jax.experimental import pallas as pl
from jax.experimental.pallas import tpu as pltpu

KERNEL_SIZE = ("K5", "P2", "K5", "P2")  # conv_type == 2
EPS = 1e-5
K = 5  # temporal conv kernel size


# ------------------------------ fused kernel ---------------------------------
def _tconv_fused_kernel(x_ref,
                        w1_ref, s1_ref, b1_ref,
                        dw1_ref, pw1_ref, g1_ref, be1_ref,
                        w2_ref, s2_ref, b2_ref,
                        dw2_ref, pw2_ref, g2_ref, be2_ref,
                        fcw_ref, fcb_ref,
                        vf_ref, lg_ref,
                        xw_sc, wt_sc):
    """Whole TemporalConv forward for one sample, resident in VMEM (f32)."""
    f32 = jnp.float32

    def conv_bn_relu(v, w_ref, s_ref, b_ref):
        # Conv1d(k=5, pad=0) as ONE im2col matmul, eval-mode BN folded into scale/bias.
        t_in, _ = v.shape
        t_out = t_in - (K - 1)
        cols = jnp.concatenate([v[k:k + t_out, :] for k in range(K)], axis=1)
        h = jnp.dot(cols, w_ref[...].astype(f32), preferred_element_type=f32)
        return jnp.maximum(h * s_ref[...] + b_ref[...], 0.0)

    def ldp(v, dw_ref, pw_ref, g_ref, be_ref):
        t, c = v.shape
        dw = dw_ref[...].astype(f32)
        zrow = jnp.zeros((1, c), f32)
        xp = jnp.concatenate([zrow, v, zrow], axis=0)          # zero pad in time
        # depthwise Conv1d(k=3, pad=1, groups=C): 3 broadcast-mul adds on the VPU
        d = xp[0:t, :] * dw[0:1, :] + v * dw[1:2, :] + xp[2:t + 2, :] * dw[2:3, :]
        # pointwise Conv1d(k=1, bias=False): MXU matmul
        p = jnp.dot(d, pw_ref[...].astype(f32), preferred_element_type=f32)
        # InstanceNorm1d (per channel over time, biased variance, affine)
        mean = jnp.mean(p, axis=0, keepdims=True)
        var = jnp.mean(jnp.square(p - mean), axis=0, keepdims=True)
        p = (p - mean) * jax.lax.rsqrt(var + EPS)
        p = p * g_ref[...] + be_ref[...]
        # Coeff_Sigmoid(12) then exp (EUP)
        w = jnp.exp(12.0 * jax.nn.sigmoid(p))
        # avg_pool1d(x*w,2,2)/avg_pool1d(w,2,2) == pairwise-sum ratio.
        # Pairwise sums via strided VMEM reads (pl.ds stride=2) from scratch.
        t_half = t // 2
        xw_sc[0:t, :] = v * w
        wt_sc[0:t, :] = w
        num = (xw_sc[pl.ds(0, t_half, stride=2), :]
               + xw_sc[pl.ds(1, t_half, stride=2), :])
        den = (wt_sc[pl.ds(0, t_half, stride=2), :]
               + wt_sc[pl.ds(1, t_half, stride=2), :])
        return num * pl.reciprocal(den, approx=True)

    x = x_ref[0].astype(f32)                                   # (T, C_in)
    h = conv_bn_relu(x, w1_ref, s1_ref, b1_ref)                # K5
    h = ldp(h, dw1_ref, pw1_ref, g1_ref, be1_ref)              # P2
    h = conv_bn_relu(h, w2_ref, s2_ref, b2_ref)                # K5
    h = ldp(h, dw2_ref, pw2_ref, g2_ref, be2_ref)              # P2
    vf_ref[0] = h.astype(vf_ref.dtype)                         # (T', H)
    lg_ref[0] = (jnp.dot(h, fcw_ref[...].astype(f32), preferred_element_type=f32)
                 + fcb_ref[...]).astype(lg_ref.dtype)          # (T', NC)


# --------------------------------- wrapper ------------------------------------
def update_lgt(lgt):
    for ksz in KERNEL_SIZE:
        if ksz[0] == "P":
            lgt = lgt // int(ksz[1])
        else:
            lgt = lgt - (int(ksz[1]) - 1)
    return lgt


def temporal_conv_forward(params, frame_feat, lgt):
    # frame_feat: (B, C_in, T) NCW like the PyTorch module; lgt: (B,) int32
    B, C_in, T = frame_feat.shape
    H = params["fc_w"].shape[0]
    NC = params["fc_w"].shape[1]
    T1 = T - 4                     # after conv1
    T2 = T1 // 2                   # after LDP1
    T3 = T2 - 4                    # after conv2
    T4 = T3 // 2                   # after LDP2

    x = jnp.transpose(frame_feat, (0, 2, 1))          # (B, T, C_in): channels on lanes
    w1 = params["conv1_w"].reshape(K * C_in, H)       # im2col weight layout
    w2 = params["conv2_w"].reshape(K * H, H)

    def full(shape):
        # Constant index_map -> block never changes across the batch grid,
        # so the weight is DMA'd into VMEM once and reused every step.
        return pl.BlockSpec(shape, lambda b, _s=len(shape): (0,) * _s)

    vf, lg = pl.pallas_call(
        _tconv_fused_kernel,
        out_shape=(jax.ShapeDtypeStruct((B, T4, H), x.dtype),
                   jax.ShapeDtypeStruct((B, T4, NC), x.dtype)),
        grid=(B,),
        in_specs=[
            pl.BlockSpec((1, T, C_in), lambda b: (b, 0, 0)),
            full((K * C_in, H)), full((1, H)), full((1, H)),
            full((3, H)), full((H, H)), full((1, H)), full((1, H)),
            full((K * H, H)), full((1, H)), full((1, H)),
            full((3, H)), full((H, H)), full((1, H)), full((1, H)),
            full((H, NC)), full((1, NC)),
        ],
        out_specs=(pl.BlockSpec((1, T4, H), lambda b: (b, 0, 0)),
                   pl.BlockSpec((1, T4, NC), lambda b: (b, 0, 0))),
        scratch_shapes=[pltpu.VMEM((T1, H), jnp.float32),
                        pltpu.VMEM((T1, H), jnp.float32)],
        compiler_params=pltpu.CompilerParams(
            dimension_semantics=("parallel",),          # v7x: shard batch over 2 TCs
            vmem_limit_bytes=48 * 1024 * 1024),
    )(x, w1, params["bn1_scale"], params["bn1_bias"],
      params["ldp1_dw"], params["ldp1_pw"], params["ldp1_gamma"], params["ldp1_beta"],
      w2, params["bn2_scale"], params["bn2_bias"],
      params["ldp2_dw"], params["ldp2_pw"], params["ldp2_gamma"], params["ldp2_beta"],
      params["fc_w"], params["fc_b"])

    return {
        "visual_feat": jnp.transpose(vf, (1, 0, 2)),   # (T', B, H)
        "conv_logits": jnp.transpose(lg, (1, 0, 2)),   # (T', B, NC)
        "feat_len": update_lgt(lgt),   # TODO(synk): torch .cpu() has no JAX equivalent; stays a device array
    }


# ------------------------------- parameters -----------------------------------
def init_params(key, input_size, hidden_size, num_classes, dtype=jnp.float32):
    ks = jax.random.split(key, 11)

    def conv_block(kw, kb, kg, kbt, c_in, c_out):
        w = 0.1 * jax.random.normal(kw, (K, c_in, c_out), dtype)
        conv_b = 0.1 * jax.random.normal(kb, (c_out,), dtype)
        gamma = 1.0 + 0.1 * jax.random.normal(kg, (c_out,), dtype)
        beta = 0.1 * jax.random.normal(kbt, (c_out,), dtype)
        running_mean = jnp.zeros((c_out,), dtype)
        running_var = jnp.ones((c_out,), dtype)
        scale = gamma / jnp.sqrt(running_var + EPS)      # BN (eval mode) folded
        bias = beta + scale * (conv_b - running_mean)
        return w, scale.reshape(1, c_out), bias.reshape(1, c_out)

    def ldp_block(kd, c):
        dw = 0.3 * jax.random.normal(kd, (3, c), dtype)          # depthwise taps
        pw = jnp.zeros((c, c), dtype)                            # module fills 0.0
        gamma = jnp.ones((1, c), dtype)                          # InstanceNorm affine
        beta = jnp.zeros((1, c), dtype)
        return dw, pw, gamma, beta

    p = {}
    p["conv1_w"], p["bn1_scale"], p["bn1_bias"] = conv_block(
        ks[0], ks[1], ks[2], ks[3], input_size, hidden_size)
    p["ldp1_dw"], p["ldp1_pw"], p["ldp1_gamma"], p["ldp1_beta"] = ldp_block(ks[4], hidden_size)
    p["conv2_w"], p["bn2_scale"], p["bn2_bias"] = conv_block(
        ks[5], ks[6], ks[7], ks[8], hidden_size, hidden_size)
    p["ldp2_dw"], p["ldp2_pw"], p["ldp2_gamma"], p["ldp2_beta"] = ldp_block(ks[9], hidden_size)
    p["fc_w"] = 0.1 * jax.random.normal(ks[10], (hidden_size, num_classes), dtype)
    p["fc_b"] = 0.1 * jnp.ones((1, num_classes), dtype)
    return p


# --------------------------- plain-JAX reference ------------------------------
def reference_forward(params, frame_feat):
    x = jnp.transpose(frame_feat, (0, 2, 1)).astype(jnp.float32)

    def conv_ref(x, w, scale, bias):
        kk = w.shape[0]
        T_out = x.shape[1] - kk + 1
        acc = sum(jnp.einsum("btc,cd->btd", x[:, k:k + T_out, :], w[k]) for k in range(kk))
        return jnp.maximum(acc * scale + bias, 0.0)

    def ldp_ref(x, dw, pw, gamma, beta):
        B, T, C = x.shape
        xp = jnp.pad(x, ((0, 0), (1, 1), (0, 0)))
        h = xp[:, 0:T] * dw[0] + xp[:, 1:T + 1] * dw[1] + xp[:, 2:T + 2] * dw[2]
        h = jnp.einsum("btc,cd->btd", h, pw)
        mean = h.mean(axis=1, keepdims=True)
        var = jnp.square(h - mean).mean(axis=1, keepdims=True)
        h = (h - mean) / jnp.sqrt(var + EPS) * gamma + beta
        w_ = jnp.exp(12.0 * jax.nn.sigmoid(h))
        T2 = T // 2
        num = (x * w_)[:, :2 * T2].reshape(B, T2, 2, C).sum(axis=2)
        den = w_[:, :2 * T2].reshape(B, T2, 2, C).sum(axis=2)
        return num / den

    x = conv_ref(x, params["conv1_w"], params["bn1_scale"], params["bn1_bias"])
    x = ldp_ref(x, params["ldp1_dw"], params["ldp1_pw"], params["ldp1_gamma"], params["ldp1_beta"])
    x = conv_ref(x, params["conv2_w"], params["bn2_scale"], params["bn2_bias"])
    x = ldp_ref(x, params["ldp2_dw"], params["ldp2_pw"], params["ldp2_gamma"], params["ldp2_beta"])
    logits = jnp.einsum("bth,hn->btn", x, params["fc_w"]) + params["fc_b"]
    return {
        "visual_feat": jnp.transpose(x, (1, 0, 2)),
        "conv_logits": jnp.transpose(logits, (1, 0, 2)),
    }


if __name__ == "__main__":
    B, C_IN, HID, T, NUM_CLASSES = 2, 16, 32, 32, 10
    key = jax.random.PRNGKey(0)
    kp, kx = jax.random.split(key)
    params = init_params(kp, C_IN, HID, NUM_CLASSES)
    frame_feat = jax.random.normal(kx, (B, C_IN, T), jnp.float32)
    lgt = jnp.array([T, T - 2], jnp.int32)

    out = temporal_conv_forward(params, frame_feat, lgt)
    jax.block_until_ready(out)

    ref = reference_forward(params, frame_feat)
    np.testing.assert_allclose(np.asarray(out["visual_feat"]),
                               np.asarray(ref["visual_feat"]), rtol=5e-2, atol=5e-2)
    np.testing.assert_allclose(np.asarray(out["conv_logits"]),
                               np.asarray(ref["conv_logits"]), rtol=5e-2, atol=5e-2)
    assert out["visual_feat"].shape == (5, B, HID)
    assert out["conv_logits"].shape == (5, B, NUM_CLASSES)
    assert np.array_equal(np.asarray(out["feat_len"]), np.array([5, 4]))
    print("KERNEL_OK")
</pallas_src>

<mosaic_0001>
module attributes {stable_mosaic.version = 11 : i64} {
  func.func @_tconv_fused_kernel(%arg0: i32, %arg1: memref<1x32x16xf32, #tpu.memory_space<vmem>>, %arg2: memref<80x32xf32, #tpu.memory_space<vmem>>, %arg3: memref<1x32xf32, #tpu.memory_space<vmem>>, %arg4: memref<1x32xf32, #tpu.memory_space<vmem>>, %arg5: memref<3x32xf32, #tpu.memory_space<vmem>>, %arg6: memref<32x32xf32, #tpu.memory_space<vmem>>, %arg7: memref<1x32xf32, #tpu.memory_space<vmem>>, %arg8: memref<1x32xf32, #tpu.memory_space<vmem>>, %arg9: memref<160x32xf32, #tpu.memory_space<vmem>>, %arg10: memref<1x32xf32, #tpu.memory_space<vmem>>, %arg11: memref<1x32xf32, #tpu.memory_space<vmem>>, %arg12: memref<3x32xf32, #tpu.memory_space<vmem>>, %arg13: memref<32x32xf32, #tpu.memory_space<vmem>>, %arg14: memref<1x32xf32, #tpu.memory_space<vmem>>, %arg15: memref<1x32xf32, #tpu.memory_space<vmem>>, %arg16: memref<32x10xf32, #tpu.memory_space<vmem>>, %arg17: memref<1x10xf32, #tpu.memory_space<vmem>>, %arg18: memref<1x5x32xf32, #tpu.memory_space<vmem>>, %arg19: memref<1x5x10xf32, #tpu.memory_space<vmem>>, %arg20: memref<28x32xf32, #tpu.memory_space<vmem>>, %arg21: memref<28x32xf32, #tpu.memory_space<vmem>>) attributes {dimension_semantics = [#tpu.dimension_semantics<parallel>], iteration_bounds = array<i64: 2>, scalar_prefetch = 0 : i64, scratch_operands = 2 : i64, tpu.core_type = #tpu.core_type<tc>, window_params = [{transform_indices = @transform_0, window_bounds = array<i64: 1, 32, 16>}, {pipeline_mode = #tpu.pipeline_mode<synchronous>, transform_indices = @transform_1, window_bounds = array<i64: 80, 32>}, {pipeline_mode = #tpu.pipeline_mode<synchronous>, transform_indices = @transform_2, window_bounds = array<i64: 1, 32>}, {pipeline_mode = #tpu.pipeline_mode<synchronous>, transform_indices = @transform_3, window_bounds = array<i64: 1, 32>}, {pipeline_mode = #tpu.pipeline_mode<synchronous>, transform_indices = @transform_4, window_bounds = array<i64: 3, 32>}, {pipeline_mode = #tpu.pipeline_mode<synchronous>, transform_indices = @transform_5, window_bounds = array<i64: 32, 32>}, {pipeline_mode = #tpu.pipeline_mode<synchronous>, transform_indices = @transform_6, window_bounds = array<i64: 1, 32>}, {pipeline_mode = #tpu.pipeline_mode<synchronous>, transform_indices = @transform_7, window_bounds = array<i64: 1, 32>}, {pipeline_mode = #tpu.pipeline_mode<synchronous>, transform_indices = @transform_8, window_bounds = array<i64: 160, 32>}, {pipeline_mode = #tpu.pipeline_mode<synchronous>, transform_indices = @transform_9, window_bounds = array<i64: 1, 32>}, {pipeline_mode = #tpu.pipeline_mode<synchronous>, transform_indices = @transform_10, window_bounds = array<i64: 1, 32>}, {pipeline_mode = #tpu.pipeline_mode<synchronous>, transform_indices = @transform_11, window_bounds = array<i64: 3, 32>}, {pipeline_mode = #tpu.pipeline_mode<synchronous>, transform_indices = @transform_12, window_bounds = array<i64: 32, 32>}, {pipeline_mode = #tpu.pipeline_mode<synchronous>, transform_indices = @transform_13, window_bounds = array<i64: 1, 32>}, {pipeline_mode = #tpu.pipeline_mode<synchronous>, transform_indices = @transform_14, window_bounds = array<i64: 1, 32>}, {pipeline_mode = #tpu.pipeline_mode<synchronous>, transform_indices = @transform_15, window_bounds = array<i64: 32, 10>}, {pipeline_mode = #tpu.pipeline_mode<synchronous>, transform_indices = @transform_16, window_bounds = array<i64: 1, 10>}, {transform_indices = @transform_17, window_bounds = array<i64: 1, 5, 32>}, {transform_indices = @transform_18, window_bounds = array<i64: 1, 5, 10>}]} {
    %c0 = arith.constant 0 : index
    %c0_0 = arith.constant 0 : index
    %c0_1 = arith.constant 0 : index
    %0 = vector.load %arg1[%c0, %c0_0, %c0_1] : memref<1x32x16xf32, #tpu.memory_space<vmem>>, vector<1x32x16xf32>
    %1 = vector.shape_cast %0 : vector<1x32x16xf32> to vector<32x16xf32>
    %2 = vector.extract_strided_slice %1 {offsets = [0, 0], sizes = [28, 16], strides = [1, 1]} : vector<32x16xf32> to vector<28x16xf32>
    %3 = vector.extract_strided_slice %1 {offsets = [1, 0], sizes = [28, 16], strides = [1, 1]} : vector<32x16xf32> to vector<28x16xf32>
    %4 = vector.extract_strided_slice %1 {offsets = [2, 0], sizes = [28, 16], strides = [1, 1]} : vector<32x16xf32> to vector<28x16xf32>
    %5 = vector.extract_strided_slice %1 {offsets = [3, 0], sizes = [28, 16], strides = [1, 1]} : vector<32x16xf32> to vector<28x16xf32>
    %6 = vector.extract_strided_slice %1 {offsets = [4, 0], sizes = [28, 16], strides = [1, 1]} : vector<32x16xf32> to vector<28x16xf32>
    %7 = tpu.concatenate %2, %3, %4, %5, %6 in 1 : vector<28x16xf32>, vector<28x16xf32>, vector<28x16xf32>, vector<28x16xf32>, vector<28x16xf32> -> vector<28x80xf32>
    %c0_2 = arith.constant 0 : index
    %c0_3 = arith.constant 0 : index
    %8 = vector.load %arg2[%c0_2, %c0_3] : memref<80x32xf32, #tpu.memory_space<vmem>>, vector<80x32xf32>
    %cst = arith.constant dense<0.000000e+00> : vector<28x32xf32>
    %9 = tpu.matmul %7, %8, %cst {dimension_numbers = #tpu.dot_dimension_numbers<[1], [0], [0], [1], [0, 0, 1, 1], [], []>} : vector<28x80xf32>, vector<80x32xf32>, vector<28x32xf32> -> vector<28x32xf32>
    %c0_4 = arith.constant 0 : index
    %c0_5 = arith.constant 0 : index
    %10 = vector.load %arg3[%c0_4, %c0_5] : memref<1x32xf32, #tpu.memory_space<vmem>>, vector<1x32xf32>
    %11 = vector.broadcast %10 : vector<1x32xf32> to vector<28x32xf32>
    %12 = arith.mulf %9, %11 : vector<28x32xf32>
    %c0_6 = arith.constant 0 : index
    %c0_7 = arith.constant 0 : index
    %13 = vector.load %arg4[%c0_6, %c0_7] : memref<1x32xf32, #tpu.memory_space<vmem>>, vector<1x32xf32>
    %14 = vector.broadcast %13 : vector<1x32xf32> to vector<28x32xf32>
    %15 = arith.addf %12, %14 : vector<28x32xf32>
    %cst_8 = arith.constant 0.000000e+00 : f32
    %16 = vector.broadcast %cst_8 : f32 to vector<28x32xf32>
    %17 = arith.maximumf %15, %16 : vector<28x32xf32>
    %c0_9 = arith.constant 0 : index
    %c0_10 = arith.constant 0 : index
    %18 = vector.load %arg5[%c0_9, %c0_10] : memref<3x32xf32, #tpu.memory_space<vmem>>, vector<3x32xf32>
    %cst_11 = arith.constant 0.000000e+00 : f32
    %19 = vector.broadcast %cst_11 : f32 to vector<1x32xf32>
    %20 = tpu.concatenate %19, %17, %19 in 0 : vector<1x32xf32>, vector<28x32xf32>, vector<1x32xf32> -> vector<30x32xf32>
    %21 = vector.extract_strided_slice %20 {offsets = [0, 0], sizes = [28, 32], strides = [1, 1]} : vector<30x32xf32> to vector<28x32xf32>
    %22 = vector.extract_strided_slice %18 {offsets = [0, 0], sizes = [1, 32], strides = [1, 1]} : vector<3x32xf32> to vector<1x32xf32>
    %23 = vector.broadcast %22 : vector<1x32xf32> to vector<28x32xf32>
    %24 = arith.mulf %21, %23 : vector<28x32xf32>
    %25 = vector.extract_strided_slice %18 {offsets = [1, 0], sizes = [1, 32], strides = [1, 1]} : vector<3x32xf32> to vector<1x32xf32>
    %26 = vector.broadcast %25 : vector<1x32xf32> to vector<28x32xf32>
    %27 = arith.mulf %17, %26 : vector<28x32xf32>
    %28 = arith.addf %24, %27 : vector<28x32xf32>
    %29 = vector.extract_strided_slice %20 {offsets = [2, 0], sizes = [28, 32], strides = [1, 1]} : vector<30x32xf32> to vector<28x32xf32>
    %30 = vector.extract_strided_slice %18 {offsets = [2, 0], sizes = [1, 32], strides = [1, 1]} : vector<3x32xf32> to vector<1x32xf32>
    %31 = vector.broadcast %30 : vector<1x32xf32> to vector<28x32xf32>
    %32 = arith.mulf %29, %31 : vector<28x32xf32>
    %33 = arith.addf %28, %32 : vector<28x32xf32>
    %c0_12 = arith.constant 0 : index
    %c0_13 = arith.constant 0 : index
    %34 = vector.load %arg6[%c0_12, %c0_13] : memref<32x32xf32, #tpu.memory_space<vmem>>, vector<32x32xf32>
    %cst_14 = arith.constant dense<0.000000e+00> : vector<28x32xf32>
    %35 = tpu.matmul %33, %34, %cst_14 {dimension_numbers = #tpu.dot_dimension_numbers<[1], [0], [0], [1], [0, 0, 1, 1], [], []>} : vector<28x32xf32>, vector<32x32xf32>, vector<28x32xf32> -> vector<28x32xf32>
    %cst_15 = arith.constant dense<0.000000e+00> : vector<32xf32>
    %36 = vector.multi_reduction <add>, %35, %cst_15 [0] : vector<28x32xf32> to vector<32xf32>
    %37 = vector.shape_cast %36 : vector<32xf32> to vector<1x32xf32>
    %cst_16 = arith.constant 2.800000e+01 : f32
    %38 = vector.broadcast %cst_16 : f32 to vector<1x32xf32>
    %39 = arith.divf %37, %38 : vector<1x32xf32>
    %40 = vector.broadcast %39 : vector<1x32xf32> to vector<28x32xf32>
    %41 = arith.subf %35, %40 : vector<28x32xf32>
    %42 = arith.mulf %41, %41 : vector<28x32xf32>
    %cst_17 = arith.constant dense<0.000000e+00> : vector<32xf32>
    %43 = vector.multi_reduction <add>, %42, %cst_17 [0] : vector<28x32xf32> to vector<32xf32>
    %44 = vector.shape_cast %43 : vector<32xf32> to vector<1x32xf32>
    %cst_18 = arith.constant 2.800000e+01 : f32
    %45 = vector.broadcast %cst_18 : f32 to vector<1x32xf32>
    %46 = arith.divf %44, %45 : vector<1x32xf32>
    %47 = vector.broadcast %39 : vector<1x32xf32> to vector<28x32xf32>
    %48 = arith.subf %35, %47 : vector<28x32xf32>
    %cst_19 = arith.constant 9.99999974E-6 : f32
    %49 = vector.broadcast %cst_19 : f32 to vector<1x32xf32>
    %50 = arith.addf %46, %49 : vector<1x32xf32>
    %51 = math.rsqrt %50 : vector<1x32xf32>
    %52 = vector.broadcast %51 : vector<1x32xf32> to vector<28x32xf32>
    %53 = arith.mulf %48, %52 : vector<28x32xf32>
    %c0_20 = arith.constant 0 : index
    %c0_21 = arith.constant 0 : index
    %54 = vector.load %arg7[%c0_20, %c0_21] : memref<1x32xf32, #tpu.memory_space<vmem>>, vector<1x32xf32>
    %55 = vector.broadcast %54 : vector<1x32xf32> to vector<28x32xf32>
    %56 = arith.mulf %53, %55 : vector<28x32xf32>
    %c0_22 = arith.constant 0 : index
    %c0_23 = arith.constant 0 : index
    %57 = vector.load %arg8[%c0_22, %c0_23] : memref<1x32xf32, #tpu.memory_space<vmem>>, vector<1x32xf32>
    %58 = vector.broadcast %57 : vector<1x32xf32> to vector<28x32xf32>
    %59 = arith.addf %56, %58 : vector<28x32xf32>
    %60 = arith.negf %59 : vector<28x32xf32>
    %61 = math.exp %60 : vector<28x32xf32>
    %cst_24 = arith.constant 1.000000e+00 : f32
    %62 = vector.broadcast %cst_24 : f32 to vector<28x32xf32>
    %63 = arith.addf %62, %61 : vector<28x32xf32>
    %64 = arith.divf %62, %63 : vector<28x32xf32>
    %cst_25 = arith.constant 1.200000e+01 : f32
    %65 = vector.broadcast %cst_25 : f32 to vector<28x32xf32>
    %66 = arith.mulf %65, %64 : vector<28x32xf32>
    %67 = math.exp %66 : vector<28x32xf32>
    %68 = arith.mulf %17, %67 : vector<28x32xf32>
    %c0_26 = arith.constant 0 : index
    %c0_27 = arith.constant 0 : index
    %69 = vector.load %arg20[%c0_26, %c0_27] : memref<28x32xf32, #tpu.memory_space<vmem>>, vector<28x32xf32>
    tpu.vector_store %arg20[%c0_26, %c0_27], %68 {strides = array<i32>} : memref<28x32xf32, #tpu.memory_space<vmem>>, vector<28x32xf32>,
    %c0_28 = arith.constant 0 : index
    %c0_29 = arith.constant 0 : index
    %70 = vector.load %arg21[%c0_28, %c0_29] : memref<28x32xf32, #tpu.memory_space<vmem>>, vector<28x32xf32>
    tpu.vector_store %arg21[%c0_28, %c0_29], %67 {strides = array<i32>} : memref<28x32xf32, #tpu.memory_space<vmem>>, vector<28x32xf32>,
    %c0_30 = arith.constant 0 : index
    %c0_31 = arith.constant 0 : index
    %71 = tpu.strided_load %arg20[%c0_30, %c0_31] {strides = array<i32: 2, 1>} : memref<28x32xf32, #tpu.memory_space<vmem>>, vector<14x32xf32>
    %c1 = arith.constant 1 : index
    %c0_32 = arith.constant 0 : index
    %72 = tpu.strided_load %arg20[%c1, %c0_32] {strides = array<i32: 2, 1>} : memref<28x32xf32, #tpu.memory_space<vmem>>, vector<14x32xf32>
    %73 = arith.addf %71, %72 : vector<14x32xf32>
    %c0_33 = arith.constant 0 : index
    %c0_34 = arith.constant 0 : index
    %74 = tpu.strided_load %arg21[%c0_33, %c0_34] {strides = array<i32: 2, 1>} : memref<28x32xf32, #tpu.memory_space<vmem>>, vector<14x32xf32>
    %c1_35 = arith.constant 1 : index
    %c0_36 = arith.constant 0 : index
    %75 = tpu.strided_load %arg21[%c1_35, %c0_36] {strides = array<i32: 2, 1>} : memref<28x32xf32, #tpu.memory_space<vmem>>, vector<14x32xf32>
    %76 = arith.addf %74, %75 : vector<14x32xf32>
    %77 = tpu.reciprocal %76 {approx = true} : vector<14x32xf32> -> vector<14x32xf32>
    %78 = arith.mulf %73, %77 : vector<14x32xf32>
    %79 = vector.extract_strided_slice %78 {offsets = [0, 0], sizes = [10, 32], strides = [1, 1]} : vector<14x32xf32> to vector<10x32xf32>
    %80 = vector.extract_strided_slice %78 {offsets = [1, 0], sizes = [10, 32], strides = [1, 1]} : vector<14x32xf32> to vector<10x32xf32>
    %81 = vector.extract_strided_slice %78 {offsets = [2, 0], sizes = [10, 32], strides = [1, 1]} : vector<14x32xf32> to vector<10x32xf32>
    %82 = vector.extract_strided_slice %78 {offsets = [3, 0], sizes = [10, 32], strides = [1, 1]} : vector<14x32xf32> to vector<10x32xf32>
    %83 = vector.extract_strided_slice %78 {offsets = [4, 0], sizes = [10, 32], strides = [1, 1]} : vector<14x32xf32> to vector<10x32xf32>
    %84 = tpu.concatenate %79, %80, %81, %82, %83 in 1 : vector<10x32xf32>, vector<10x32xf32>, vector<10x32xf32>, vector<10x32xf32>, vector<10x32xf32> -> vector<10x160xf32>
    %c0_37 = arith.constant 0 : index
    %c0_38 = arith.constant 0 : index
    %85 = vector.load %arg9[%c0_37, %c0_38] : memref<160x32xf32, #tpu.memory_space<vmem>>, vector<160x32xf32>
    %cst_39 = arith.constant dense<0.000000e+00> : vector<10x32xf32>
    %86 = tpu.matmul %84, %85, %cst_39 {dimension_numbers = #tpu.dot_dimension_numbers<[1], [0], [0], [1], [0, 0, 1, 1], [], []>} : vector<10x160xf32>, vector<160x32xf32>, vector<10x32xf32> -> vector<10x32xf32>
    %c0_40 = arith.constant 0 : index
    %c0_41 = arith.constant 0 : index
    %87 = vector.load %arg10[%c0_40, %c0_41] : memref<1x32xf32, #tpu.memory_space<vmem>>, vector<1x32xf32>
    %88 = vector.broadcast %87 : vector<1x32xf32> to vector<10x32xf32>
    %89 = arith.mulf %86, %88 : vector<10x32xf32>
    %c0_42 = arith.constant 0 : index
    %c0_43 = arith.constant 0 : index
    %90 = vector.load %arg11[%c0_42, %c0_43] : memref<1x32xf32, #tpu.memory_space<vmem>>, vector<1x32xf32>
    %91 = vector.broadcast %90 : vector<1x32xf32> to vector<10x32xf32>
    %92 = arith.addf %89, %91 : vector<10x32xf32>
    %cst_44 = arith.constant 0.000000e+00 : f32
    %93 = vector.broadcast %cst_44 : f32 to vector<10x32xf32>
    %94 = arith.maximumf %92, %93 : vector<10x32xf32>
    %c0_45 = arith.constant 0 : index
    %c0_46 = arith.constant 0 : index
    %95 = vector.load %arg12[%c0_45, %c0_46] : memref<3x32xf32, #tpu.memory_space<vmem>>, vector<3x32xf32>
    %cst_47 = arith.constant 0.000000e+00 : f32
    %96 = vector.broadcast %cst_47 : f32 to vector<1x32xf32>
    %97 = tpu.concatenate %96, %94, %96 in 0 : vector<1x32xf32>, vector<10x32xf32>, vector<1x32xf32> -> vector<12x32xf32>
    %98 = vector.extract_strided_slice %97 {offsets = [0, 0], sizes = [10, 32], strides = [1, 1]} : vector<12x32xf32> to vector<10x32xf32>
    %99 = vector.extract_strided_slice %95 {offsets = [0, 0], sizes = [1, 32], strides = [1, 1]} : vector<3x32xf32> to vector<1x32xf32>
    %100 = vector.broadcast %99 : vector<1x32xf32> to vector<10x32xf32>
    %101 = arith.mulf %98, %100 : vector<10x32xf32>
    %102 = vector.extract_strided_slice %95 {offsets = [1, 0], sizes = [1, 32], strides = [1, 1]} : vector<3x32xf32> to vector<1x32xf32>
    %103 = vector.broadcast %102 : vector<1x32xf32> to vector<10x32xf32>
    %104 = arith.mulf %94, %103 : vector<10x32xf32>
    %105 = arith.addf %101, %104 : vector<10x32xf32>
    %106 = vector.extract_strided_slice %97 {offsets = [2, 0], sizes = [10, 32], strides = [1, 1]} : vector<12x32xf32> to vector<10x32xf32>
    %107 = vector.extract_strided_slice %95 {offsets = [2, 0], sizes = [1, 32], strides = [1, 1]} : vector<3x32xf32> to vector<1x32xf32>
    %108 = vector.broadcast %107 : vector<1x32xf32> to vector<10x32xf32>
    %109 = arith.mulf %106, %108 : vector<10x32xf32>
    %110 = arith.addf %105, %109 : vector<10x32xf32>
    %c0_48 = arith.constant 0 : index
    %c0_49 = arith.constant 0 : index
    %111 = vector.load %arg13[%c0_48, %c0_49] : memref<32x32xf32, #tpu.memory_space<vmem>>, vector<32x32xf32>
    %cst_50 = arith.constant dense<0.000000e+00> : vector<10x32xf32>
    %112 = tpu.matmul %110, %111, %cst_50 {dimension_numbers = #tpu.dot_dimension_numbers<[1], [0], [0], [1], [0, 0, 1, 1], [], []>} : vector<10x32xf32>, vector<32x32xf32>, vector<10x32xf32> -> vector<10x32xf32>
    %cst_51 = arith.constant dense<0.000000e+00> : vector<32xf32>
    %113 = vector.multi_reduction <add>, %112, %cst_51 [0] : vector<10x32xf32> to vector<32xf32>
    %114 = vector.shape_cast %113 : vector<32xf32> to vector<1x32xf32>
    %cst_52 = arith.constant 1.000000e+01 : f32
    %115 = vector.broadcast %cst_52 : f32 to vector<1x32xf32>
    %116 = arith.divf %114, %115 : vector<1x32xf32>
    %117 = vector.broadcast %116 : vector<1x32xf32> to vector<10x32xf32>
    %118 = arith.subf %112, %117 : vector<10x32xf32>
    %119 = arith.mulf %118, %118 : vector<10x32xf32>
    %cst_53 = arith.constant dense<0.000000e+00> : vector<32xf32>
    %120 = vector.multi_reduction <add>, %119, %cst_53 [0] : vector<10x32xf32> to vector<32xf32>
    %121 = vector.shape_cast %120 : vector<32xf32> to vector<1x32xf32>
    %cst_54 = arith.constant 1.000000e+01 : f32
    %122 = vector.broadcast %cst_54 : f32 to vector<1x32xf32>
    %123 = arith.divf %121, %122 : vector<1x32xf32>
    %124 = vector.broadcast %116 : vector<1x32xf32> to vector<10x32xf32>
    %125 = arith.subf %112, %124 : vector<10x32xf32>
    %cst_55 = arith.constant 9.99999974E-6 : f32
    %126 = vector.broadcast %cst_55 : f32 to vector<1x32xf32>
    %127 = arith.addf %123, %126 : vector<1x32xf32>
    %128 = math.rsqrt %127 : vector<1x32xf32>
    %129 = vector.broadcast %128 : vector<1x32xf32> to vector<10x32xf32>
    %130 = arith.mulf %125, %129 : vector<10x32xf32>
    %c0_56 = arith.constant 0 : index
    %c0_57 = arith.constant 0 : index
    %131 = vector.load %arg14[%c0_56, %c0_57] : memref<1x32xf32, #tpu.memory_space<vmem>>, vector<1x32xf32>
    %132 = vector.broadcast %131 : vector<1x32xf32> to vector<10x32xf32>
    %133 = arith.mulf %130, %132 : vector<10x32xf32>
    %c0_58 = arith.constant 0 : index
    %c0_59 = arith.constant 0 : index
    %134 = vector.load %arg15[%c0_58, %c0_59] : memref<1x32xf32, #tpu.memory_space<vmem>>, vector<1x32xf32>
    %135 = vector.broadcast %134 : vector<1x32xf32> to vector<10x32xf32>
    %136 = arith.addf %133, %135 : vector<10x32xf32>
    %137 = arith.negf %136 : vector<10x32xf32>
    %138 = math.exp %137 : vector<10x32xf32>
    %cst_60 = arith.constant 1.000000e+00 : f32
    %139 = vector.broadcast %cst_60 : f32 to vector<10x32xf32>
    %140 = arith.addf %139, %138 : vector<10x32xf32>
    %141 = arith.divf %139, %140 : vector<10x32xf32>
    %cst_61 = arith.constant 1.200000e+01 : f32
    %142 = vector.broadcast %cst_61 : f32 to vector<10x32xf32>
    %143 = arith.mulf %142, %141 : vector<10x32xf32>
    %144 = math.exp %143 : vector<10x32xf32>
    %145 = arith.mulf %94, %144 : vector<10x32xf32>
    %c0_62 = arith.constant 0 : index
    %c0_63 = arith.constant 0 : index
    %146 = vector.load %arg20[%c0_62, %c0_63] : memref<28x32xf32, #tpu.memory_space<vmem>>, vector<10x32xf32>
    tpu.vector_store %arg20[%c0_62, %c0_63], %145 {strides = array<i32>} : memref<28x32xf32, #tpu.memory_space<vmem>>, vector<10x32xf32>,
    %c0_64 = arith.constant 0 : index
    %c0_65 = arith.constant 0 : index
    %147 = vector.load %arg21[%c0_64, %c0_65] : memref<28x32xf32, #tpu.memory_space<vmem>>, vector<10x32xf32>
    tpu.vector_store %arg21[%c0_64, %c0_65], %144 {strides = array<i32>} : memref<28x32xf32, #tpu.memory_space<vmem>>, vector<10x32xf32>,
    %c0_66 = arith.constant 0 : index
    %c0_67 = arith.constant 0 : index
    %148 = tpu.strided_load %arg20[%c0_66, %c0_67] {strides = array<i32: 2, 1>} : memref<28x32xf32, #tpu.memory_space<vmem>>, vector<5x32xf32>
    %c1_68 = arith.constant 1 : index
    %c0_69 = arith.constant 0 : index
    %149 = tpu.strided_load %arg20[%c1_68, %c0_69] {strides = array<i32: 2, 1>} : memref<28x32xf32, #tpu.memory_space<vmem>>, vector<5x32xf32>
    %150 = arith.addf %148, %149 : vector<5x32xf32>
    %c0_70 = arith.constant 0 : index
    %c0_71 = arith.constant 0 : index
    %151 = tpu.strided_load %arg21[%c0_70, %c0_71] {strides = array<i32: 2, 1>} : memref<28x32xf32, #tpu.memory_space<vmem>>, vector<5x32xf32>
    %c1_72 = arith.constant 1 : index
    %c0_73 = arith.constant 0 : index
    %152 = tpu.strided_load %arg21[%c1_72, %c0_73] {strides = array<i32: 2, 1>} : memref<28x32xf32, #tpu.memory_space<vmem>>, vector<5x32xf32>
    %153 = arith.addf %151, %152 : vector<5x32xf32>
    %154 = tpu.reciprocal %153 {approx = true} : vector<5x32xf32> -> vector<5x32xf32>
    %155 = arith.mulf %150, %154 : vector<5x32xf32>
    %c0_74 = arith.constant 0 : index
    %c0_75 = arith.constant 0 : index
    %c0_76 = arith.constant 0 : index
    %156 = vector.load %arg18[%c0_74, %c0_75, %c0_76] : memref<1x5x32xf32, #tpu.memory_space<vmem>>, vector<1x5x32xf32>
    %157 = vector.shape_cast %156 : vector<1x5x32xf32> to vector<5x32xf32>
    %158 = vector.shape_cast %155 : vector<5x32xf32> to vector<1x5x32xf32>
    tpu.vector_store %arg18[%c0_74, %c0_75, %c0_76], %158 {strides = array<i32>} : memref<1x5x32xf32, #tpu.memory_space<vmem>>, vector<1x5x32xf32>,
    %c0_77 = arith.constant 0 : index
    %c0_78 = arith.constant 0 : index
    %159 = vector.load %arg16[%c0_77, %c0_78] : memref<32x10xf32, #tpu.memory_space<vmem>>, vector<32x10xf32>
    %cst_79 = arith.constant dense<0.000000e+00> : vector<5x10xf32>
    %160 = tpu.matmul %155, %159, %cst_79 {dimension_numbers = #tpu.dot_dimension_numbers<[1], [0], [0], [1], [0, 0, 1, 1], [], []>} : vector<5x32xf32>, vector<32x10xf32>, vector<5x10xf32> -> vector<5x10xf32>
    %c0_80 = arith.constant 0 : index
    %c0_81 = arith.constant 0 : index
    %161 = vector.load %arg17[%c0_80, %c0_81] : memref<1x10xf32, #tpu.memory_space<vmem>>, vector<1x10xf32>
    %162 = vector.broadcast %161 : vector<1x10xf32> to vector<5x10xf32>
    %163 = arith.addf %160, %162 : vector<5x10xf32>
    %c0_82 = arith.constant 0 : index
    %c0_83 = arith.constant 0 : index
    %c0_84 = arith.constant 0 : index
    %164 = vector.load %arg19[%c0_82, %c0_83, %c0_84] : memref<1x5x10xf32, #tpu.memory_space<vmem>>, vector<1x5x10xf32>
    %165 = vector.shape_cast %164 : vector<1x5x10xf32> to vector<5x10xf32>
    %166 = vector.shape_cast %163 : vector<5x10xf32> to vector<1x5x10xf32>
    tpu.vector_store %arg19[%c0_82, %c0_83, %c0_84], %166 {strides = array<i32>} : memref<1x5x10xf32, #tpu.memory_space<vmem>>, vector<1x5x10xf32>,
    return
  }
  func.func @transform_0(%arg0: i32) -> (i32, i32, i32) {
    %c0_i32 = arith.constant 0 : i32
    %c0_i32_0 = arith.constant 0 : i32
    %c0_i32_1 = arith.constant 0 : i32
    return %arg0, %c0_i32, %c0_i32_0 : i32, i32, i32
  }
  func.func @transform_1(%arg0: i32) -> (i32, i32) {
    %c0_i32 = arith.constant 0 : i32
    %c0_i32_0 = arith.constant 0 : i32
    %c0_i32_1 = arith.constant 0 : i32
    return %c0_i32, %c0_i32_0 : i32, i32
  }
  func.func @transform_2(%arg0: i32) -> (i32, i32) {
    %c0_i32 = arith.constant 0 : i32
    %c0_i32_0 = arith.constant 0 : i32
    %c0_i32_1 = arith.constant 0 : i32
    return %c0_i32, %c0_i32_0 : i32, i32
  }
  func.func @transform_3(%arg0: i32) -> (i32, i32) {
    %c0_i32 = arith.constant 0 : i32
    %c0_i32_0 = arith.constant 0 : i32
    %c0_i32_1 = arith.constant 0 : i32
    return %c0_i32, %c0_i32_0 : i32, i32
  }
  func.func @transform_4(%arg0: i32) -> (i32, i32) {
    %c0_i32 = arith.constant 0 : i32
    %c0_i32_0 = arith.constant 0 : i32
    %c0_i32_1 = arith.constant 0 : i32
    return %c0_i32, %c0_i32_0 : i32, i32
  }
  func.func @transform_5(%arg0: i32) -> (i32, i32) {
    %c0_i32 = arith.constant 0 : i32
    %c0_i32_0 = arith.constant 0 : i32
    %c0_i32_1 = arith.constant 0 : i32
    return %c0_i32, %c0_i32_0 : i32, i32
  }
  func.func @transform_6(%arg0: i32) -> (i32, i32) {
    %c0_i32 = arith.constant 0 : i32
    %c0_i32_0 = arith.constant 0 : i32
    %c0_i32_1 = arith.constant 0 : i32
    return %c0_i32, %c0_i32_0 : i32, i32
  }
  func.func @transform_7(%arg0: i32) -> (i32, i32) {
    %c0_i32 = arith.constant 0 : i32
    %c0_i32_0 = arith.constant 0 : i32
    %c0_i32_1 = arith.constant 0 : i32
    return %c0_i32, %c0_i32_0 : i32, i32
  }
  func.func @transform_8(%arg0: i32) -> (i32, i32) {
    %c0_i32 = arith.constant 0 : i32
    %c0_i32_0 = arith.constant 0 : i32
    %c0_i32_1 = arith.constant 0 : i32
    return %c0_i32, %c0_i32_0 : i32, i32
  }
  func.func @transform_9(%arg0: i32) -> (i32, i32) {
    %c0_i32 = arith.constant 0 : i32
    %c0_i32_0 = arith.constant 0 : i32
    %c0_i32_1 = arith.constant 0 : i32
    return %c0_i32, %c0_i32_0 : i32, i32
  }
  func.func @transform_10(%arg0: i32) -> (i32, i32) {
    %c0_i32 = arith.constant 0 : i32
    %c0_i32_0 = arith.constant 0 : i32
    %c0_i32_1 = arith.constant 0 : i32
    return %c0_i32, %c0_i32_0 : i32, i32
  }
  func.func @transform_11(%arg0: i32) -> (i32, i32) {
    %c0_i32 = arith.constant 0 : i32
    %c0_i32_0 = arith.constant 0 : i32
    %c0_i32_1 = arith.constant 0 : i32
    return %c0_i32, %c0_i32_0 : i32, i32
  }
  func.func @transform_12(%arg0: i32) -> (i32, i32) {
    %c0_i32 = arith.constant 0 : i32
    %c0_i32_0 = arith.constant 0 : i32
    %c0_i32_1 = arith.constant 0 : i32
    return %c0_i32, %c0_i32_0 : i32, i32
  }
  func.func @transform_13(%arg0: i32) -> (i32, i32) {
    %c0_i32 = arith.constant 0 : i32
    %c0_i32_0 = arith.constant 0 : i32
    %c0_i32_1 = arith.constant 0 : i32
    return %c0_i32, %c0_i32_0 : i32, i32
  }
  func.func @transform_14(%arg0: i32) -> (i32, i32) {
    %c0_i32 = arith.constant 0 : i32
    %c0_i32_0 = arith.constant 0 : i32
    %c0_i32_1 = arith.constant 0 : i32
    return %c0_i32, %c0_i32_0 : i32, i32
  }
  func.func @transform_15(%arg0: i32) -> (i32, i32) {
    %c0_i32 = arith.constant 0 : i32
    %c0_i32_0 = arith.constant 0 : i32
    %c0_i32_1 = arith.constant 0 : i32
    return %c0_i32, %c0_i32_0 : i32, i32
  }
  func.func @transform_16(%arg0: i32) -> (i32, i32) {
    %c0_i32 = arith.constant 0 : i32
    %c0_i32_0 = arith.constant 0 : i32
    %c0_i32_1 = arith.constant 0 : i32
    return %c0_i32, %c0_i32_0 : i32, i32
  }
  func.func @transform_17(%arg0: i32) -> (i32, i32, i32) {
    %c0_i32 = arith.constant 0 : i32
    %c0_i32_0 = arith.constant 0 : i32
    %c0_i32_1 = arith.constant 0 : i32
    return %arg0, %c0_i32, %c0_i32_0 : i32, i32, i32
  }
  func.func @transform_18(%arg0: i32) -> (i32, i32, i32) {
    %c0_i32 = arith.constant 0 : i32
    %c0_i32_0 = arith.constant 0 : i32
    %c0_i32_1 = arith.constant 0 : i32
    return %arg0, %c0_i32, %c0_i32_0 : i32, i32, i32
  }
}

</mosaic_0001>

<llo_original>
// kernel: tpu_custom_call.1
$region0: #{tpu_custom_call.1}
  #allocation0 [shape = 'u32[]', space=smem, size = 0x4, offset = 0x4, fixed_abs, tag = 'smem constant byte address 0x4 - core index']
  #allocation1 [shape = 'u32[144,128]{1,0:T(1,128)}', space=vmem, size = 0x12000, scoped, tag = 'internal scratch']
  #allocation2 [shape = 'f32[28,32]{1,0:T(8,128)}', space=vmem, size = 0x4000, scoped, tag = 'scratch operand']
  #allocation3 [shape = 'f32[28,32]{1,0:T(8,128)}', space=vmem, size = 0x4000, scoped, tag = 'scratch operand']
  %s0 = inlined_call_operand.vmem [shape: f32[2,32,16], index: 0, kind: input, shape index: {}]
  %s1 = inlined_call_operand.vmem [shape: f32[80,32], index: 1, kind: input, shape index: {}]
  %s2 = inlined_call_operand.vmem [shape: f32[1,32], index: 2, kind: input, shape index: {}]
  %s3 = inlined_call_operand.vmem [shape: f32[1,32], index: 3, kind: input, shape index: {}]
  %s4 = inlined_call_operand.vmem [shape: f32[3,32], index: 4, kind: input, shape index: {}]
  %s5 = inlined_call_operand.vmem [shape: f32[32,32], index: 5, kind: input, shape index: {}]
  %s6 = inlined_call_operand.vmem [shape: f32[1,32], index: 6, kind: input, shape index: {}]
  %s7 = inlined_call_operand.vmem [shape: f32[1,32], index: 7, kind: input, shape index: {}]
  %s8 = inlined_call_operand.vmem [shape: f32[160,32], index: 8, kind: input, shape index: {}]
  %s9 = inlined_call_operand.vmem [shape: f32[1,32], index: 9, kind: input, shape index: {}]
  %s10 = inlined_call_operand.vmem [shape: f32[1,32], index: 10, kind: input, shape index: {}]
  %s11 = inlined_call_operand.vmem [shape: f32[3,32], index: 11, kind: input, shape index: {}]
  %s12 = inlined_call_operand.vmem [shape: f32[32,32], index: 12, kind: input, shape index: {}]
  %s13 = inlined_call_operand.vmem [shape: f32[1,32], index: 13, kind: input, shape index: {}]
  %s14 = inlined_call_operand.vmem [shape: f32[1,32], index: 14, kind: input, shape index: {}]
  %s15 = inlined_call_operand.vmem [shape: f32[32,10], index: 15, kind: input, shape index: {}]
  %s16 = inlined_call_operand.vmem [shape: f32[1,10], index: 16, kind: input, shape index: {}]
  %s17 = inlined_call_operand.vmem [shape: f32[2,5,32], index: 17, kind: output, shape index: {0}]
  %s18 = inlined_call_operand.vmem [shape: f32[2,5,10], index: 18, kind: output, shape index: {1}]
  %19 = xla_tuple %s17, %s18
  %s20 = sld [smem:[#allocation0]]
  $region109: #{tpu_custom_call.1} parent=0
    _
  %s22 = ssub.s32 1, %s20
  %s23 = scalar_select 0, %s22, %s20
  loop: start=0, step=1, limit=4
  $region2: #{tpu_custom_call.1} parent=0 // loop_pre_header
    _
  $region3: #{tpu_custom_call.1} parent=0 // loop_header
    %s25 = sphi 0, %s29
    %p26 = scmp.ge.s32.totalorder %s25, 4
    %s35 = sphi 0, %s37
    %s38 = sphi 0, %s35
    %s39 = sphi 0, %s38
    %s55 = sphi 0, %s39
    %s59 = sphi 0, %s59
    %s61 = sphi 0, %s59
    %s62 = sphi 0, %s61
    %s76 = sphi 0, %s62
    %s80 = sphi 0, %s80
    %s82 = sphi 0, %s80
    %s83 = sphi 0, %s82
    %s97 = sphi 0, %s83
    %s101 = sphi 0, %s101
    %s103 = sphi 0, %s101
    %s104 = sphi 0, %s103
    %s118 = sphi 0, %s104
    %s122 = sphi 0, %s122
    %s124 = sphi 0, %s122
    %s125 = sphi 0, %s124
    %s139 = sphi 0, %s125
    %s143 = sphi 0, %s143
    %s145 = sphi 0, %s143
    %s146 = sphi 0, %s145
    %s160 = sphi 0, %s146
    %s164 = sphi 0, %s164
    %s166 = sphi 0, %s164
    %s167 = sphi 0, %s166
    %s181 = sphi 0, %s167
    %s185 = sphi 0, %s185
    %s187 = sphi 0, %s185
    %s188 = sphi 0, %s187
    %s202 = sphi 0, %s188
    %s206 = sphi 0, %s206
    %s208 = sphi 0, %s206
    %s209 = sphi 0, %s208
    %s223 = sphi 0, %s209
    %s227 = sphi 0, %s227
    %s229 = sphi 0, %s227
    %s230 = sphi 0, %s229
    %s244 = sphi 0, %s230
    %s248 = sphi 0, %s248
    %s250 = sphi 0, %s248
    %s251 = sphi 0, %s250
    %s265 = sphi 0, %s251
    %s269 = sphi 0, %s269
    %s271 = sphi 0, %s269
    %s272 = sphi 0, %s271
    %s286 = sphi 0, %s272
    %s290 = sphi 0, %s290
    %s292 = sphi 0, %s290
    %s293 = sphi 0, %s292
    %s307 = sphi 0, %s293
    %s311 = sphi 0, %s311
    %s313 = sphi 0, %s311
    %s314 = sphi 0, %s313
    %s328 = sphi 0, %s314
    %s332 = sphi 0, %s332
    %s334 = sphi 0, %s332
    %s335 = sphi 0, %s334
    %s349 = sphi 0, %s335
    %s353 = sphi 0, %s353
    %s355 = sphi 0, %s353
    %s356 = sphi 0, %s355
    %s370 = sphi 0, %s356
    %s374 = sphi 0, %s374
    %s376 = sphi 0, %s374
    %s377 = sphi 0, %s376
    %s391 = sphi 0, %s377
    %s397 = sphi 0, %s399
    %s400 = sphi 0, %s397
    %s401 = sphi 0, %s400
    %s417 = sphi 0, %s401
    %s423 = sphi 0, %s425
    %s426 = sphi 0, %s423
    %s427 = sphi 0, %s426
    %s443 = sphi 0, %s427
  $region4: #{tpu_custom_call.1} parent=0 // loop_header_branch
    %28 = sbr.rel (%p26) target = $region8
  $region5: #{tpu_custom_call.1} parent=0 // loop_body
    %s30 = ssub.s32 %s25, 1
    %s31 = ssub.s32 %s25, 2
    %s32 = sadd.s32 %s25, 1
    %s33 = ssub.s32 %s25, %s32
    %p34 = scmp.eq.s32.totalorder %s33, 0
    %s36 = sadd.s32 %s35, 1
    %s37 = scalar_select %p34, %s35, %s36
    %p40 = pneg %p34
    %p41 = scmp.eq.s32.totalorder %s25, 1
    %p42 = por %p40, %p41
    %p43 = scmp.ne.s32.totalorder %s35, %s38
    %p44 = scmp.eq.s32.totalorder %s25, 0
    %p45 = por %p43, %p44
    %p46 = scmp.ne.s32.totalorder %s35, %s38
    %p47 = scmp.eq.s32.totalorder %s30, 1
    %p48 = por %p46, %p47
    %p49 = scmp.ne.s32.totalorder %s38, %s39
    %p50 = scmp.eq.s32.totalorder %s30, 0
    %p51 = por %p49, %p50
    %p52 = scmp.ne.s32.totalorder %s38, %s39
    %p53 = scmp.eq.s32.totalorder %s31, 1
    %p54 = por %p52, %p53
    %p56 = scmp.ne.s32.totalorder %s39, %s55
    %p57 = scmp.eq.s32.totalorder %s31, 0
    %p58 = por %p56, %p57
    %s60 = sadd.s32 %s59, 1
    %p63 = scmp.eq.s32.totalorder %s25, 1
    %p64 = scmp.ne.s32.totalorder %s59, %s61
    %p65 = scmp.eq.s32.totalorder %s25, 0
    %p66 = por %p64, %p65
    %p67 = scmp.ne.s32.totalorder %s59, %s61
    %p68 = scmp.eq.s32.totalorder %s30, 1
    %p69 = por %p67, %p68
    %p70 = scmp.ne.s32.totalorder %s61, %s62
    %p71 = scmp.eq.s32.totalorder %s30, 0
    %p72 = por %p70, %p71
    %p73 = scmp.ne.s32.totalorder %s61, %s62
    %p74 = scmp.eq.s32.totalorder %s31, 1
    %p75 = por %p73, %p74
    %p77 = scmp.ne.s32.totalorder %s62, %s76
    %p78 = scmp.eq.s32.totalorder %s31, 0
    %p79 = por %p77, %p78
    %s81 = sadd.s32 %s80, 1
    %p84 = scmp.eq.s32.totalorder %s25, 1
    %p85 = scmp.ne.s32.totalorder %s80, %s82
    %p86 = scmp.eq.s32.totalorder %s25, 0
    %p87 = por %p85, %p86
    %p88 = scmp.ne.s32.totalorder %s80, %s82
    %p89 = scmp.eq.s32.totalorder %s30, 1
    %p90 = por %p88, %p89
    %p91 = scmp.ne.s32.totalorder %s82, %s83
    %p92 = scmp.eq.s32.totalorder %s30, 0
    %p93 = por %p91, %p92
    %p94 = scmp.ne.s32.totalorder %s82, %s83
    %p95 = scmp.eq.s32.totalorder %s31, 1
    %p96 = por %p94, %p95
    %p98 = scmp.ne.s32.totalorder %s83, %s97
    %p99 = scmp.eq.s32.totalorder %s31, 0
    %p100 = por %p98, %p99
    %s102 = sadd.s32 %s101, 1
    %p105 = scmp.eq.s32.totalorder %s25, 1
    %p106 = scmp.ne.s32.totalorder %s101, %s103
    %p107 = scmp.eq.s32.totalorder %s25, 0
    %p108 = por %p106, %p107
    %p109 = scmp.ne.s32.totalorder %s101, %s103
    %p110 = scmp.eq.s32.totalorder %s30, 1
    %p111 = por %p109, %p110
    %p112 = scmp.ne.s32.totalorder %s103, %s104
    %p113 = scmp.eq.s32.totalorder %s30, 0
    %p114 = por %p112, %p113
    %p115 = scmp.ne.s32.totalorder %s103, %s104
    %p116 = scmp.eq.s32.totalorder %s31, 1
    %p117 = por %p115, %p116
    %p119 = scmp.ne.s32.totalorder %s104, %s118
    %p120 = scmp.eq.s32.totalorder %s31, 0
    %p121 = por %p119, %p120
    %s123 = sadd.s32 %s122, 1
    %p126 = scmp.eq.s32.totalorder %s25, 1
    %p127 = scmp.ne.s32.totalorder %s122, %s124
    %p128 = scmp.eq.s32.totalorder %s25, 0
    %p129 = por %p127, %p128
    %p130 = scmp.ne.s32.totalorder %s122, %s124
    %p131 = scmp.eq.s32.totalorder %s30, 1
    %p132 = por %p130, %p131
    %p133 = scmp.ne.s32.totalorder %s124, %s125
    %p134 = scmp.eq.s32.totalorder %s30, 0
    %p135 = por %p133, %p134
    %p136 = scmp.ne.s32.totalorder %s124, %s125
    %p137 = scmp.eq.s32.totalorder %s31, 1
    %p138 = por %p136, %p137
    %p140 = scmp.ne.s32.totalorder %s125, %s139
    %p141 = scmp.eq.s32.totalorder %s31, 0
    %p142 = por %p140, %p141
    %s144 = sadd.s32 %s143, 1
    %p147 = scmp.eq.s32.totalorder %s25, 1
    %p148 = scmp.ne.s32.totalorder %s143, %s145
    %p149 = scmp.eq.s32.totalorder %s25, 0
    %p150 = por %p148, %p149
    %p151 = scmp.ne.s32.totalorder %s143, %s145
    %p152 = scmp.eq.s32.totalorder %s30, 1
    %p153 = por %p151, %p152
    %p154 = scmp.ne.s32.totalorder %s145, %s146
    %p155 = scmp.eq.s32.totalorder %s30, 0
    %p156 = por %p154, %p155
    %p157 = scmp.ne.s32.totalorder %s145, %s146
    %p158 = scmp.eq.s32.totalorder %s31, 1
    %p159 = por %p157, %p158
    %p161 = scmp.ne.s32.totalorder %s146, %s160
    %p162 = scmp.eq.s32.totalorder %s31, 0
    %p163 = por %p161, %p162
    %s165 = sadd.s32 %s164, 1
    %p168 = scmp.eq.s32.totalorder %s25, 1
    %p169 = scmp.ne.s32.totalorder %s164, %s166
    %p170 = scmp.eq.s32.totalorder %s25, 0
    %p171 = por %p169, %p170
    %p172 = scmp.ne.s32.totalorder %s164, %s166
    %p173 = scmp.eq.s32.totalorder %s30, 1
    %p174 = por %p172, %p173
    %p175 = scmp.ne.s32.totalorder %s166, %s167
    %p176 = scmp.eq.s32.totalorder %s30, 0
    %p177 = por %p175, %p176
    %p178 = scmp.ne.s32.totalorder %s166, %s167
    %p179 = scmp.eq.s32.totalorder %s31, 1
    %p180 = por %p178, %p179
    %p182 = scmp.ne.s32.totalorder %s167, %s181
    %p183 = scmp.eq.s32.totalorder %s31, 0
    %p184 = por %p182, %p183
    %s186 = sadd.s32 %s185, 1
    %p189 = scmp.eq.s32.totalorder %s25, 1
    %p190 = scmp.ne.s32.totalorder %s185, %s187
    %p191 = scmp.eq.s32.totalorder %s25, 0
    %p192 = por %p190, %p191
    %p193 = scmp.ne.s32.totalorder %s185, %s187
    %p194 = scmp.eq.s32.totalorder %s30, 1
    %p195 = por %p193, %p194
    %p196 = scmp.ne.s32.totalorder %s187, %s188
    %p197 = scmp.eq.s32.totalorder %s30, 0
    %p198 = por %p196, %p197
    %p199 = scmp.ne.s32.totalorder %s187, %s188
    %p200 = scmp.eq.s32.totalorder %s31, 1
    %p201 = por %p199, %p200
    %p203 = scmp.ne.s32.totalorder %s188, %s202
    %p204 = scmp.eq.s32.totalorder %s31, 0
    %p205 = por %p203, %p204
    %s207 = sadd.s32 %s206, 1
    %p210 = scmp.eq.s32.totalorder %s25, 1
    %p211 = scmp.ne.s32.totalorder %s206, %s208
    %p212 = scmp.eq.s32.totalorder %s25, 0
    %p213 = por %p211, %p212
    %p214 = scmp.ne.s32.totalorder %s206, %s208
    %p215 = scmp.eq.s32.totalorder %s30, 1
    %p216 = por %p214, %p215
    %p217 = scmp.ne.s32.totalorder %s208, %s209
    %p218 = scmp.eq.s32.totalorder %s30, 0
    %p219 = por %p217, %p218
    %p220 = scmp.ne.s32.totalorder %s208, %s209
    %p221 = scmp.eq.s32.totalorder %s31, 1
    %p222 = por %p220, %p221
    %p224 = scmp.ne.s32.totalorder %s209, %s223
    %p225 = scmp.eq.s32.totalorder %s31, 0
    %p226 = por %p224, %p225
    %s228 = sadd.s32 %s227, 1
    %p231 = scmp.eq.s32.totalorder %s25, 1
    %p232 = scmp.ne.s32.totalorder %s227, %s229
    %p233 = scmp.eq.s32.totalorder %s25, 0
    %p234 = por %p232, %p233
    %p235 = scmp.ne.s32.totalorder %s227, %s229
    %p236 = scmp.eq.s32.totalorder %s30, 1
    %p237 = por %p235, %p236
    %p238 = scmp.ne.s32.totalorder %s229, %s230
    %p239 = scmp.eq.s32.totalorder %s30, 0
    %p240 = por %p238, %p239
    %p241 = scmp.ne.s32.totalorder %s229, %s230
    %p242 = scmp.eq.s32.totalorder %s31, 1
    %p243 = por %p241, %p242
    %p245 = scmp.ne.s32.totalorder %s230, %s244
    %p246 = scmp.eq.s32.totalorder %s31, 0
    %p247 = por %p245, %p246
    %s249 = sadd.s32 %s248, 1
    %p252 = scmp.eq.s32.totalorder %s25, 1
    %p253 = scmp.ne.s32.totalorder %s248, %s250
    %p254 = scmp.eq.s32.totalorder %s25, 0
    %p255 = por %p253, %p254
    %p256 = scmp.ne.s32.totalorder %s248, %s250
    %p257 = scmp.eq.s32.totalorder %s30, 1
    %p258 = por %p256, %p257
    %p259 = scmp.ne.s32.totalorder %s250, %s251
    %p260 = scmp.eq.s32.totalorder %s30, 0
    %p261 = por %p259, %p260
    %p262 = scmp.ne.s32.totalorder %s250, %s251
    %p263 = scmp.eq.s32.totalorder %s31, 1
    %p264 = por %p262, %p263
    %p266 = scmp.ne.s32.totalorder %s251, %s265
    %p267 = scmp.eq.s32.totalorder %s31, 0
    %p268 = por %p266, %p267
    %s270 = sadd.s32 %s269, 1
    %p273 = scmp.eq.s32.totalorder %s25, 1
    %p274 = scmp.ne.s32.totalorder %s269, %s271
    %p275 = scmp.eq.s32.totalorder %s25, 0
    %p276 = por %p274, %p275
    %p277 = scmp.ne.s32.totalorder %s269, %s271
    %p278 = scmp.eq.s32.totalorder %s30, 1
    %p279 = por %p277, %p278
    %p280 = scmp.ne.s32.totalorder %s271, %s272
    %p281 = scmp.eq.s32.totalorder %s30, 0
    %p282 = por %p280, %p281
    %p283 = scmp.ne.s32.totalorder %s271, %s272
    %p284 = scmp.eq.s32.totalorder %s31, 1
    %p285 = por %p283, %p284
    %p287 = scmp.ne.s32.totalorder %s272, %s286
    %p288 = scmp.eq.s32.totalorder %s31, 0
    %p289 = por %p287, %p288
    %s291 = sadd.s32 %s290, 1
    %p294 = scmp.eq.s32.totalorder %s25, 1
    %p295 = scmp.ne.s32.totalorder %s290, %s292
    %p296 = scmp.eq.s32.totalorder %s25, 0
    %p297 = por %p295, %p296
    %p298 = scmp.ne.s32.totalorder %s290, %s292
    %p299 = scmp.eq.s32.totalorder %s30, 1
    %p300 = por %p298, %p299
    %p301 = scmp.ne.s32.totalorder %s292, %s293
    %p302 = scmp.eq.s32.totalorder %s30, 0
    %p303 = por %p301, %p302
    %p304 = scmp.ne.s32.totalorder %s292, %s293
    %p305 = scmp.eq.s32.totalorder %s31, 1
    %p306 = por %p304, %p305
    %p308 = scmp.ne.s32.totalorder %s293, %s307
    %p309 = scmp.eq.s32.totalorder %s31, 0
    %p310 = por %p308, %p309
    %s312 = sadd.s32 %s311, 1
    %p315 = scmp.eq.s32.totalorder %s25, 1
    %p316 = scmp.ne.s32.totalorder %s311, %s313
    %p317 = scmp.eq.s32.totalorder %s25, 0
    %p318 = por %p316, %p317
    %p319 = scmp.ne.s32.totalorder %s311, %s313
    %p320 = scmp.eq.s32.totalorder %s30, 1
    %p321 = por %p319, %p320
    %p322 = scmp.ne.s32.totalorder %s313, %s314
    %p323 = scmp.eq.s32.totalorder %s30, 0
    %p324 = por %p322, %p323
    %p325 = scmp.ne.s32.totalorder %s313, %s314
    %p326 = scmp.eq.s32.totalorder %s31, 1
    %p327 = por %p325, %p326
    %p329 = scmp.ne.s32.totalorder %s314, %s328
    %p330 = scmp.eq.s32.totalorder %s31, 0
    %p331 = por %p329, %p330
    %s333 = sadd.s32 %s332, 1
    %p336 = scmp.eq.s32.totalorder %s25, 1
    %p337 = scmp.ne.s32.totalorder %s332, %s334
    %p338 = scmp.eq.s32.totalorder %s25, 0
    %p339 = por %p337, %p338
    %p340 = scmp.ne.s32.totalorder %s332, %s334
    %p341 = scmp.eq.s32.totalorder %s30, 1
    %p342 = por %p340, %p341
    %p343 = scmp.ne.s32.totalorder %s334, %s335
    %p344 = scmp.eq.s32.totalorder %s30, 0
    %p345 = por %p343, %p344
    %p346 = scmp.ne.s32.totalorder %s334, %s335
    %p347 = scmp.eq.s32.totalorder %s31, 1
    %p348 = por %p346, %p347
    %p350 = scmp.ne.s32.totalorder %s335, %s349
    %p351 = scmp.eq.s32.totalorder %s31, 0
    %p352 = por %p350, %p351
    %s354 = sadd.s32 %s353, 1
    %p357 = scmp.eq.s32.totalorder %s25, 1
    %p358 = scmp.ne.s32.totalorder %s353, %s355
    %p359 = scmp.eq.s32.totalorder %s25, 0
    %p360 = por %p358, %p359
    %p361 = scmp.ne.s32.totalorder %s353, %s355
    %p362 = scmp.eq.s32.totalorder %s30, 1
    %p363 = por %p361, %p362
    %p364 = scmp.ne.s32.totalorder %s355, %s356
    %p365 = scmp.eq.s32.totalorder %s30, 0
    %p366 = por %p364, %p365
    %p367 = scmp.ne.s32.totalorder %s355, %s356
    %p368 = scmp.eq.s32.totalorder %s31, 1
    %p369 = por %p367, %p368
    %p371 = scmp.ne.s32.totalorder %s356, %s370
    %p372 = scmp.eq.s32.totalorder %s31, 0
    %p373 = por %p371, %p372
    %s375 = sadd.s32 %s374, 1
    %p378 = scmp.eq.s32.totalorder %s25, 1
    %p379 = scmp.ne.s32.totalorder %s374, %s376
    %p380 = scmp.eq.s32.totalorder %s25, 0
    %p381 = por %p379, %p380
    %p382 = scmp.ne.s32.totalorder %s374, %s376
    %p383 = scmp.eq.s32.totalorder %s30, 1
    %p384 = por %p382, %p383
    %p385 = scmp.ne.s32.totalorder %s376, %s377
    %p386 = scmp.eq.s32.totalorder %s30, 0
    %p387 = por %p385, %p386
    %p388 = scmp.ne.s32.totalorder %s376, %s377
    %p389 = scmp.eq.s32.totalorder %s31, 1
    %p390 = por %p388, %p389
    %p392 = scmp.ne.s32.totalorder %s377, %s391
    %p393 = scmp.eq.s32.totalorder %s31, 0
    %p394 = por %p392, %p393
    %s395 = ssub.s32 %s25, %s32
    %p396 = scmp.eq.s32.totalorder %s395, 0
    %s398 = sadd.s32 %s397, 1
    %s399 = scalar_select %p396, %s397, %s398
    %p402 = pneg %p396
    %p403 = scmp.eq.s32.totalorder %s25, 1
    %p404 = por %p402, %p403
    %p405 = scmp.ne.s32.totalorder %s397, %s400
    %p406 = scmp.eq.s32.totalorder %s25, 0
    %p407 = por %p405, %p406
    %p408 = scmp.ne.s32.totalorder %s397, %s400
    %p409 = scmp.eq.s32.totalorder %s30, 1
    %p410 = por %p408, %p409
    %p411 = scmp.ne.s32.totalorder %s400, %s401
    %p412 = scmp.eq.s32.totalorder %s30, 0
    %p413 = por %p411, %p412
    %p414 = scmp.ne.s32.totalorder %s400, %s401
    %p415 = scmp.eq.s32.totalorder %s31, 1
    %p416 = por %p414, %p415
    %p418 = scmp.ne.s32.totalorder %s401, %s417
    %p419 = scmp.eq.s32.totalorder %s31, 0
    %p420 = por %p418, %p419
    %s421 = ssub.s32 %s25, %s32
    %p422 = scmp.eq.s32.totalorder %s421, 0
    %s424 = sadd.s32 %s423, 1
    %s425 = scalar_select %p422, %s423, %s424
    %p428 = pneg %p422
    %p429 = scmp.eq.s32.totalorder %s25, 1
    %p430 = por %p428, %p429
    %p431 = scmp.ne.s32.totalorder %s423, %s426
    %p432 = scmp.eq.s32.totalorder %s25, 0
    %p433 = por %p431, %p432
    %p434 = scmp.ne.s32.totalorder %s423, %s426
    %p435 = scmp.eq.s32.totalorder %s30, 1
    %p436 = por %p434, %p435
    %p437 = scmp.ne.s32.totalorder %s426, %s427
    %p438 = scmp.eq.s32.totalorder %s30, 0
    %p439 = por %p437, %p438
    %p440 = scmp.ne.s32.totalorder %s426, %s427
    %p441 = scmp.eq.s32.totalorder %s31, 1
    %p442 = por %p440, %p441
    %p444 = scmp.ne.s32.totalorder %s427, %s443
    %p445 = scmp.eq.s32.totalorder %s31, 0
    %p446 = por %p444, %p445
    %p447 = scmp.le.s32.totalorder 1, %s25
    %p448 = scmp.lt.s32.totalorder %s25, 3
    %p449 = pnand %p447, %p448
    %p450 = pneg %p449
    // Predicated region
    $region9: #{tpu_custom_call.1} parent=5 // pred_check
      _
    $region10: #{tpu_custom_call.1} parent=5 // pred_check_branch
      %452 = sbr.rel (%p449) target = $region12
    $region11: #{tpu_custom_call.1} parent=5 // pred_region
      %s453 = ssub.s32 %s25, 1
      // Predicated region
      $region13: #{tpu_custom_call.1} parent=11 // pred_check
        %p454 = pneg %p72
      $region14: #{tpu_custom_call.1} parent=11 // pred_check_branch
        %456 = sbr.rel (%p454) target = $region16
      $region15: #{tpu_custom_call.1} parent=11 // pred_region
        _
      $region16: #{tpu_custom_call.1} parent=11 // pred_fallthru
        _
      // Predicated region
      $region17: #{tpu_custom_call.1} parent=11 // pred_check
        %p457 = pneg %p93
      $region18: #{tpu_custom_call.1} parent=11 // pred_check_branch
        %459 = sbr.rel (%p457) target = $region20
      $region19: #{tpu_custom_call.1} parent=11 // pred_region
        _
      $region20: #{tpu_custom_call.1} parent=11 // pred_fallthru
        _
      // Predicated region
      $region21: #{tpu_custom_call.1} parent=11 // pred_check
        %p460 = pneg %p114
      $region22: #{tpu_custom_call.1} parent=11 // pred_check_branch
        %462 = sbr.rel (%p460) target = $region24
      $region23: #{tpu_custom_call.1} parent=11 // pred_region
        _
      $region24: #{tpu_custom_call.1} parent=11 // pred_fallthru
        _
      // Predicated region
      $region25: #{tpu_custom_call.1} parent=11 // pred_check
        %p463 = pneg %p135
      $region26: #{tpu_custom_call.1} parent=11 // pred_check_branch
        %465 = sbr.rel (%p463) target = $region28
      $region27: #{tpu_custom_call.1} parent=11 // pred_region
        _
      $region28: #{tpu_custom_call.1} parent=11 // pred_fallthru
        _
      // Predicated region
      $region29: #{tpu_custom_call.1} parent=11 // pred_check
        %p466 = pneg %p156
      $region30: #{tpu_custom_call.1} parent=11 // pred_check_branch
        %468 = sbr.rel (%p466) target = $region32
      $region31: #{tpu_custom_call.1} parent=11 // pred_region
        _
      $region32: #{tpu_custom_call.1} parent=11 // pred_fallthru
        _
      // Predicated region
      $region33: #{tpu_custom_call.1} parent=11 // pred_check
        %p469 = pneg %p177
      $region34: #{tpu_custom_call.1} parent=11 // pred_check_branch
        %471 = sbr.rel (%p469) target = $region36
      $region35: #{tpu_custom_call.1} parent=11 // pred_region
        _
      $region36: #{tpu_custom_call.1} parent=11 // pred_fallthru
        _
      // Predicated region
      $region37: #{tpu_custom_call.1} parent=11 // pred_check
        %p472 = pneg %p198
      $region38: #{tpu_custom_call.1} parent=11 // pred_check_branch
        %474 = sbr.rel (%p472) target = $region40
      $region39: #{tpu_custom_call.1} parent=11 // pred_region
        _
      $region40: #{tpu_custom_call.1} parent=11 // pred_fallthru
        _
      // Predicated region
      $region41: #{tpu_custom_call.1} parent=11 // pred_check
        %p475 = pneg %p219
      $region42: #{tpu_custom_call.1} parent=11 // pred_check_branch
        %477 = sbr.rel (%p475) target = $region44
      $region43: #{tpu_custom_call.1} parent=11 // pred_region
        _
      $region44: #{tpu_custom_call.1} parent=11 // pred_fallthru
        _
      // Predicated region
      $region45: #{tpu_custom_call.1} parent=11 // pred_check
        %p478 = pneg %p240
      $region46: #{tpu_custom_call.1} parent=11 // pred_check_branch
        %480 = sbr.rel (%p478) target = $region48
      $region47: #{tpu_custom_call.1} parent=11 // pred_region
        _
      $region48: #{tpu_custom_call.1} parent=11 // pred_fallthru
        _
      // Predicated region
      $region49: #{tpu_custom_call.1} parent=11 // pred_check
        %p481 = pneg %p261
      $region50: #{tpu_custom_call.1} parent=11 // pred_check_branch
        %483 = sbr.rel (%p481) target = $region52
      $region51: #{tpu_custom_call.1} parent=11 // pred_region
        _
      $region52: #{tpu_custom_call.1} parent=11 // pred_fallthru
        _
      // Predicated region
      $region53: #{tpu_custom_call.1} parent=11 // pred_check
        %p484 = pneg %p282
      $region54: #{tpu_custom_call.1} parent=11 // pred_check_branch
        %486 = sbr.rel (%p484) target = $region56
      $region55: #{tpu_custom_call.1} parent=11 // pred_region
        _
      $region56: #{tpu_custom_call.1} parent=11 // pred_fallthru
        _
      // Predicated region
      $region57: #{tpu_custom_call.1} parent=11 // pred_check
        %p487 = pneg %p303
      $region58: #{tpu_custom_call.1} parent=11 // pred_check_branch
        %489 = sbr.rel (%p487) target = $region60
      $region59: #{tpu_custom_call.1} parent=11 // pred_region
        _
      $region60: #{tpu_custom_call.1} parent=11 // pred_fallthru
        _
      // Predicated region
      $region61: #{tpu_custom_call.1} parent=11 // pred_check
        %p490 = pneg %p324
      $region62: #{tpu_custom_call.1} parent=11 // pred_check_branch
        %492 = sbr.rel (%p490) target = $region64
      $region63: #{tpu_custom_call.1} parent=11 // pred_region
        _
      $region64: #{tpu_custom_call.1} parent=11 // pred_fallthru
        _
      // Predicated region
      $region65: #{tpu_custom_call.1} parent=11 // pred_check
        %p493 = pneg %p345
      $region66: #{tpu_custom_call.1} parent=11 // pred_check_branch
        %495 = sbr.rel (%p493) target = $region68
      $region67: #{tpu_custom_call.1} parent=11 // pred_region
        _
      $region68: #{tpu_custom_call.1} parent=11 // pred_fallthru
        _
      // Predicated region
      $region69: #{tpu_custom_call.1} parent=11 // pred_check
        %p496 = pneg %p366
      $region70: #{tpu_custom_call.1} parent=11 // pred_check_branch
        %498 = sbr.rel (%p496) target = $region72
      $region71: #{tpu_custom_call.1} parent=11 // pred_region
        _
      $region72: #{tpu_custom_call.1} parent=11 // pred_fallthru
        _
      // Predicated region
      $region73: #{tpu_custom_call.1} parent=11 // pred_check
        %p499 = pneg %p387
      $region74: #{tpu_custom_call.1} parent=11 // pred_check_branch
        %501 = sbr.rel (%p499) target = $region76
      $region75: #{tpu_custom_call.1} parent=11 // pred_region
        _
      $region76: #{tpu_custom_call.1} parent=11 // pred_fallthru
        _
    $region12: #{tpu_custom_call.1} parent=5 // pred_fallthru
      _
    %p502 = scmp.lt.s32.totalorder %s25, 2
    // Predicated region
    $region77: #{tpu_custom_call.1} parent=5 // pred_check
      %p503 = pneg %p502
    $region78: #{tpu_custom_call.1} parent=5 // pred_check_branch
      %505 = sbr.rel (%p503) target = $region80
    $region79: #{tpu_custom_call.1} parent=5 // pred_region
      // Predicated region
      $region81: #{tpu_custom_call.1} parent=79 // pred_check
        %p506 = pneg %p45
      $region82: #{tpu_custom_call.1} parent=79 // pred_check_branch
        %508 = sbr.rel (%p506) target = $region84
      $region83: #{tpu_custom_call.1} parent=79 // pred_region
        %p509 = scmp.lt.s32.totalorder %s25, 1
        %s510 = scalar_select %p509, %s25, 1
        %s511 = smul.addr %s510, 4
        %s512 = smul.addr %s511, 8
        %s513 = scalar_lea.vmem %s0, %s512
      $region84: #{tpu_custom_call.1} parent=79 // pred_fallthru
        _
    $region80: #{tpu_custom_call.1} parent=5 // pred_fallthru
      _
    %p514 = scmp.le.s32.totalorder 1, %s25
    %p515 = scmp.lt.s32.totalorder %s25, 3
    %p516 = pnand %p514, %p515
    %p517 = pneg %p516
    // Predicated region
    $region85: #{tpu_custom_call.1} parent=5 // pred_check
      _
    $region86: #{tpu_custom_call.1} parent=5 // pred_check_branch
      %519 = sbr.rel (%p516) target = $region88
    $region87: #{tpu_custom_call.1} parent=5 // pred_region
      %s520 = ssub.s32 %s25, 1
      %p521 = scmp.lt.s32.totalorder %s30, 1
      %s522 = scalar_select %p521, %s30, 1
      %s523 = smul.addr %s522, 4
      %s524 = smul.addr %s523, 8
      %s525 = scalar_lea.vmem %s0, %s524
      %p526 = pneg %p51
      %p527 = pneg %p48
      %p528 = pneg %p72
      %p529 = pneg %p69
      %p530 = pneg %p93
      %p531 = pneg %p90
      %p532 = pneg %p114
      %p533 = pneg %p111
      %p534 = pneg %p135
      %p535 = pneg %p132
      %p536 = pneg %p156
      %p537 = pneg %p153
      %p538 = pneg %p177
      %p539 = pneg %p174
      %p540 = pneg %p198
      %p541 = pneg %p195
      %p542 = pneg %p219
      %p543 = pneg %p216
      %p544 = pneg %p240
      %p545 = pneg %p237
      %p546 = pneg %p261
      %p547 = pneg %p258
      %p548 = pneg %p282
      %p549 = pneg %p279
      %p550 = pneg %p303
      %p551 = pneg %p300
      %p552 = pneg %p324
      %p553 = pneg %p321
      %p554 = pneg %p345
      %p555 = pneg %p342
      %p556 = pneg %p366
      %p557 = pneg %p363
      %p558 = pneg %p387
      %p559 = pneg %p384
      %p560 = pneg %p413
      %p561 = pneg %p410
      %p562 = scmp.lt.s32.totalorder %s30, 1
      %s563 = scalar_select %p562, %s30, 1
      %s564 = smul.addr %s563, 8
      %s565 = scalar_lea.vmem %s17, %s564
      %p566 = pneg %p439
      %p567 = pneg %p436
      %p568 = scmp.lt.s32.totalorder %s30, 1
      %s569 = scalar_select %p568, %s30, 1
      %s570 = smul.addr %s569, 8
      %s571 = scalar_lea.vmem %s18, %s570
      %p572 = scmp.lt.s32.totalorder %s30, 1
      %s573 = scalar_select %p572, %s30, 1
      %s574 = smul.addr %s573, 4
      %s575 = smul.addr %s574, 8
      %s576 = scalar_lea.vmem %s0, %s575
      %p577 = scmp.lt.s32.totalorder %s30, 1
      %s578 = scalar_select %p577, %s30, 1
      %s579 = smul.addr %s578, 8
      %s580 = scalar_lea.vmem %s17, %s579
      %p581 = scmp.lt.s32.totalorder %s30, 1
      %s582 = scalar_select %p581, %s30, 1
      %s583 = smul.addr %s582, 8
      %s584 = scalar_lea.vmem %s18, %s583
      %v585 = vld [vmem:[%s576] sm:$0xff]
      %v586 = vld [vmem:[%s576 + $0x8] sm:$0xff]
      %v587 = vld [vmem:[%s576 + $0x10] sm:$0xff]
      %v588 = vld [vmem:[%s576 + $0x18] sm:$0xff]
      %vm593 = vcmask 1046528
      %v594 = vrot.slane %v585, 1
      %v595 = vrot.slane %v586, 1
      %v596 = vsel %vm593, %v594, %v595
      %v597 = vrot.slane %v587, 1
      %v598 = vsel %vm593, %v595, %v597
      %v599 = vrot.slane %v588, 1
      %v600 = vsel %vm593, %v597, %v599
      %601 = vrot.lane.b32.xlu0 %v596, 16
      %v602 = vpop.permute.xlu0 %601
      %603 = vrot.lane.b32.xlu0 %v598, 16
      %v604 = vpop.permute.xlu0 %603
      %605 = vrot.lane.b32.xlu0 %v600, 16
      %v606 = vpop.permute.xlu0 %605
      %607 = vrot.lane.b32.xlu0 %v599, 16
      %v608 = vpop.permute.xlu0 %607
      %vm613 = vcmask 1045504
      %v614 = vrot.slane %v585, 2
      %v615 = vrot.slane %v586, 2
      %v616 = vsel %vm613, %v614, %v615
      %v617 = vrot.slane %v587, 2
      %v618 = vsel %vm613, %v615, %v617
      %v619 = vrot.slane %v588, 2
      %v620 = vsel %vm613, %v617, %v619
      %621 = vrot.lane.b32.xlu0 %v616, 32
      %v622 = vpop.permute.xlu0 %621
      %623 = vrot.lane.b32.xlu0 %v618, 32
      %v624 = vpop.permute.xlu0 %623
      %625 = vrot.lane.b32.xlu0 %v620, 32
      %v626 = vpop.permute.xlu0 %625
      %627 = vrot.lane.b32.xlu0 %v619, 32
      %v628 = vpop.permute.xlu0 %627
      %vm633 = vcmask 1044480
      %v634 = vrot.slane %v585, 3
      %v635 = vrot.slane %v586, 3
      %v636 = vsel %vm633, %v634, %v635
      %v637 = vrot.slane %v587, 3
      %v638 = vsel %vm633, %v635, %v637
      %v639 = vrot.slane %v588, 3
      %v640 = vsel %vm633, %v637, %v639
      %641 = vrot.lane.b32.xlu0 %v636, 48
      %v642 = vpop.permute.xlu0 %641
      %643 = vrot.lane.b32.xlu0 %v638, 48
      %v644 = vpop.permute.xlu0 %643
      %645 = vrot.lane.b32.xlu0 %v640, 48
      %v646 = vpop.permute.xlu0 %645
      %647 = vrot.lane.b32.xlu0 %v639, 48
      %v648 = vpop.permute.xlu0 %647
      %vm653 = vcmask 1043456
      %v654 = vrot.slane %v585, 4
      %v655 = vrot.slane %v586, 4
      %v656 = vsel %vm653, %v654, %v655
      %v657 = vrot.slane %v587, 4
      %v658 = vsel %vm653, %v655, %v657
      %v659 = vrot.slane %v588, 4
      %v660 = vsel %vm653, %v657, %v659
      %661 = vrot.lane.b32.xlu0 %v656, 64
      %v662 = vpop.permute.xlu0 %661
      %663 = vrot.lane.b32.xlu0 %v658, 64
      %v664 = vpop.permute.xlu0 %663
      %665 = vrot.lane.b32.xlu0 %v660, 64
      %v666 = vpop.permute.xlu0 %665
      %667 = vrot.lane.b32.xlu0 %v659, 64
      %v668 = vpop.permute.xlu0 %667
      %vm673 = vcmask 130048
      %v674 = vsel %vm673, %v585, %v602
      %v675 = vsel %vm673, %v586, %v604
      %v676 = vsel %vm673, %v587, %v606
      %v677 = vsel %vm673, %v588, %v608
      %vm678 = vcmask 261120
      %v679 = vsel %vm678, %v674, %v622
      %v680 = vsel %vm678, %v675, %v624
      %v681 = vsel %vm678, %v676, %v626
      %v682 = vsel %vm678, %v677, %v628
      %vm683 = vcmask 392192
      %v684 = vsel %vm683, %v679, %v642
      %v685 = vsel %vm683, %v680, %v644
      %v686 = vsel %vm683, %v681, %v646
      %v687 = vsel %vm683, %v682, %v648
      %vm688 = vcmask 523264
      %v689 = vsel %vm688, %v684, %v662
      %v690 = vsel %vm688, %v685, %v664
      %v691 = vsel %vm688, %v686, %v666
      %v692 = vsel %vm688, %v687, %v668
      %v693 = vld [vmem:[%s1] sm:$0xff]
      %v694 = vld [vmem:[%s1 + $0x8] sm:$0xff]
      %v695 = vld [vmem:[%s1 + $0x10] sm:$0xff]
      %v696 = vld [vmem:[%s1 + $0x18] sm:$0xff]
      %v697 = vld [vmem:[%s1 + $0x20] sm:$0xff]
      %v698 = vld [vmem:[%s1 + $0x28] sm:$0xff]
      %v699 = vld [vmem:[%s1 + $0x30] sm:$0xff]
      %v700 = vld [vmem:[%s1 + $0x38] sm:$0xff]
      %v701 = vld [vmem:[%s1 + $0x40] sm:$0xff]
      %v702 = vld [vmem:[%s1 + $0x48] sm:$0xff]
      %vm703 = vcmask 654336
      %v705 = vsel %vm703, %v689, 0
      %v708 = vsel %vm703, %v690, 0
      %v711 = vsel %vm703, %v691, 0
      %v714 = vsel %vm703, %v692, 0
      %716 = vmatprep.subr.mxu0 0.0
      %717 = vmatpush1.msra.mxu0 %v693
      %718 = vmatprep.subr.mxu0 0.0
      %719 = vmatpush1.msra.mxu0 %v694
      %720 = vmatprep.subr.mxu0 0.0
      %721 = vmatpush1.msra.mxu0 %v695
      %722 = vmatprep.subr.mxu0 0.0
      %723 = vmatpush1.msra.mxu0 %v696
      %724 = vmatprep.subr.mxu0 0.0
      %725 = vmatpush1.msra.mxu0 %v697
      %726 = vmatprep.subr.mxu0 0.0
      %727 = vmatpush1.msra.mxu0 %v698
      %728 = vmatprep.subr.mxu0 0.0
      %729 = vmatpush1.msra.mxu0 %v699
      %730 = vmatprep.subr.mxu0 0.0
      %731 = vmatpush1.msra.mxu0 %v700
      %732 = vmatprep.subr.mxu0 0.0
      %733 = vmatpush1.msra.mxu0 %v701
      %734 = vmatprep.subr.mxu0 0.0
      %735 = vmatpush1.msra.mxu0 %v702
      %736 = vmatprep.subr.mxu0 0.0
      %737 = vmatpush1.msra.mxu0 0.0
      %738 = vmatprep.subr.mxu0 0.0
      %739 = vmatpush1.msra.mxu0 0.0
      %740 = vmatprep.subr.mxu0 0.0
      %741 = vmatpush1.msra.mxu0 0.0
      %742 = vmatprep.subr.mxu0 0.0
      %743 = vmatpush1.msra.mxu0 0.0
      %744 = vmatprep.subr.mxu0 0.0
      %745 = vmatpush1.msra.mxu0 0.0
      %746 = vmatprep.subr.mxu0 0.0
      %747 = vmatpush1.msra.mxu0 0.0
      %748 = vmatprep.subr.mxu0 0.0
      %749 = vmatpush1.msra.mxu0 0.0
      %750 = vmatprep.subr.mxu0 0.0
      %751 = vmatpush1.msra.mxu0 0.0
      %752 = vmatprep.subr.mxu0 0.0
      %753 = vmatpush1.msra.mxu0 0.0
      %754 = vmatprep.subr.mxu0 0.0
      %755 = vmatpush1.msra.mxu0 0.0
      %756 = vmatprep.subr.mxu0 0.0
      %757 = vmatpush1.msra.mxu0 0.0
      %758 = vmatprep.subr.mxu0 0.0
      %759 = vmatpush1.msra.mxu0 0.0
      %760 = vmatprep.subr.mxu0 0.0
      %761 = vmatpush1.msra.mxu0 0.0
      %762 = vmatprep.subr.mxu0 0.0
      %763 = vmatpush1.msra.mxu0 0.0
      %764 = vmatprep.subr.mxu0 0.0
      %765 = vmatpush1.msra.mxu0 0.0
      %766 = vmatprep.subr.mxu0 0.0
      %767 = vmatpush1.msra.mxu0 0.0
      %768 = vmatprep.subr.mxu0 0.0
      %769 = vmatpush1.msra.mxu0 0.0
      %770 = vmatprep.subr.mxu0 0.0
      %771 = vmatpush1.msra.mxu0 0.0
      %772 = vmatprep.subr.mxu0 0.0
      %773 = vmatpush1.msra.mxu0 0.0
      %774 = vmatprep.subr.mxu0 0.0
      %775 = vmatpush1.msra.mxu0 0.0
      %776 = vmatprep.subr.mxu0 0.0
      %777 = vmatpush1.msra.mxu0 0.0
      %778 = vmatprep.subr.mxu0 0.0
      %779 = vmatpush1.msra.mxu0 0.0
      %780 = vmatprep.mubr.f32.mxu0 0.0
      %781 = vmatmul.mubr.f32.gmra.mrb[0].mxu0 %v705
      %v782 = vpop.f32.mrb[0].mxu0
      %v783 = vadd.f32 0.0, %v782
      %v784 = vpop.f32.mrb[0].mxu0
      %785 = vmatprep.mubr.f32.mxu0 0.0
      %786 = vmatmul.mubr.f32.gmra.mrb[0].mxu0 %v708
      %v787 = vpop.f32.mrb[0].mxu0
      %v788 = vadd.f32 0.0, %v787
      %v789 = vpop.f32.mrb[0].mxu0
      %790 = vmatprep.mubr.f32.mxu0 0.0
      %791 = vmatmul.mubr.f32.gmra.mrb[0].mxu0 %v711
      %v792 = vpop.f32.mrb[0].mxu0
      %v793 = vadd.f32 0.0, %v792
      %v794 = vpop.f32.mrb[0].mxu0
      %795 = vmatprep.mubr.f32.mxu0 0.0
      %796 = vmatmul.mubr.f32.gmra.mrb[0].mxu0 %v714
      %v797 = vpop.f32.mrb[0].mxu0
      %v798 = vadd.f32 0.0, %v797
      %v799 = vpop.f32.mrb[0].mxu0
      %800 = vdwg.mxu0
      %v801 = vld [vmem:[%s2] sm:$0x1]
      %v803 = vlaneseq
      %v804 = vshrl.u32 %v803, 7
      %v805 = vsub.s32 0, %v804
      %v806 = vrot.slane %v801, %v805
      %v808 = vmul.f32 %v783, %v806
      %v809 = vmul.f32 %v788, %v806
      %v810 = vmul.f32 %v793, %v806
      %v811 = vmul.f32 %v798, %v806
      %v812 = vld [vmem:[%s3] sm:$0x1]
      %v814 = vlaneseq
      %v815 = vshrl.u32 %v814, 7
      %v816 = vsub.s32 0, %v815
      %v817 = vrot.slane %v812, %v816
      %v819 = vadd.f32 %v808, %v817
      %v820 = vadd.f32 %v809, %v817
      %v821 = vadd.f32 %v810, %v817
      %v822 = vadd.f32 %v811, %v817
      %v823 = vmax.f32 %v819, 0.0
      %v824 = vmax.f32 %v820, 0.0
      %v825 = vmax.f32 %v821, 0.0
      %v826 = vmax.f32 %v822, 0.0
      %v827 = vld [vmem:[%s4] sm:$0x7]
      %vm832 = vcmask 1040384
      %v833 = vrot.slane %v823, 7
      %v834 = vrot.slane %v824, 7
      %v835 = vsel %vm832, %v833, %v834
      %v836 = vrot.slane %v825, 7
      %v837 = vsel %vm832, %v834, %v836
      %v838 = vrot.slane %v826, 7
      %v839 = vsel %vm832, %v836, %v838
      %v844 = vsel %vm832, 0.0, %v833
      %v845 = vsel %vm633, %v839, 0.0
      %v846 = vlaneseq
      %v847 = vshrl.u32 %v846, 7
      %v848 = vsub.s32 0, %v847
      %v849 = vrot.slane %v827, %v848
      %v850 = vmul.f32 %v844, %v849
      %v851 = vmul.f32 %v835, %v849
      %v852 = vmul.f32 %v837, %v849
      %v853 = vmul.f32 %v845, %v849
      %v854 = vlaneseq
      %v855 = vshrl.u32 %v854, 7
      %v856 = vsub.s32 1, %v855
      %v857 = vrot.slane %v827, %v856
      %v858 = vmul.f32 %v823, %v857
      %v859 = vmul.f32 %v824, %v857
      %v860 = vmul.f32 %v825, %v857
      %v861 = vmul.f32 %v826, %v857
      %v862 = vadd.f32 %v850, %v858
      %v863 = vadd.f32 %v851, %v859
      %v864 = vadd.f32 %v852, %v860
      %v865 = vadd.f32 %v853, %v861
      %v866 = vlaneseq
      %v867 = vshrl.u32 %v866, 7
      %v868 = vsub.s32 2, %v867
      %v869 = vrot.slane %v827, %v868
      %v870 = vmul.f32 %v844, %v869
      %v871 = vmul.f32 %v835, %v869
      %v872 = vmul.f32 %v837, %v869
      %v873 = vmul.f32 %v845, %v869
      %v878 = vrot.slane %v870, 2
      %v879 = vrot.slane %v871, 2
      %v880 = vsel %vm613, %v878, %v879
      %v881 = vrot.slane %v872, 2
      %v882 = vsel %vm613, %v879, %v881
      %v883 = vrot.slane %v873, 2
      %v884 = vsel %vm613, %v881, %v883
      %v889 = vadd.f32 %v862, %v880
      %v890 = vadd.f32 %v863, %v882
      %v891 = vadd.f32 %v864, %v884
      %v892 = vadd.f32 %v865, %v883
      %v893 = vld [vmem:[%s5] sm:$0xff]
      %v894 = vld [vmem:[%s5 + $0x8] sm:$0xff]
      %v895 = vld [vmem:[%s5 + $0x10] sm:$0xff]
      %v896 = vld [vmem:[%s5 + $0x18] sm:$0xff]
      %v898 = vsel %vm678, %v889, 0
      %v901 = vsel %vm678, %v890, 0
      %v904 = vsel %vm678, %v891, 0
      %v907 = vsel %vm678, %v892, 0
      %909 = vmatprep.subr.mxu0 0.0
      %910 = vmatpush1.msra.mxu0 %v893
      %911 = vmatprep.subr.mxu0 0.0
      %912 = vmatpush1.msra.mxu0 %v894
      %913 = vmatprep.subr.mxu0 0.0
      %914 = vmatpush1.msra.mxu0 %v895
      %915 = vmatprep.subr.mxu0 0.0
      %916 = vmatpush1.msra.mxu0 %v896
      %917 = vmatprep.subr.mxu0 0.0
      %918 = vmatpush1.msra.mxu0 0.0
      %919 = vmatprep.subr.mxu0 0.0
      %920 = vmatpush1.msra.mxu0 0.0
      %921 = vmatprep.subr.mxu0 0.0
      %922 = vmatpush1.msra.mxu0 0.0
      %923 = vmatprep.subr.mxu0 0.0
      %924 = vmatpush1.msra.mxu0 0.0
      %925 = vmatprep.subr.mxu0 0.0
      %926 = vmatpush1.msra.mxu0 0.0
      %927 = vmatprep.subr.mxu0 0.0
      %928 = vmatpush1.msra.mxu0 0.0
      %929 = vmatprep.subr.mxu0 0.0
      %930 = vmatpush1.msra.mxu0 0.0
      %931 = vmatprep.subr.mxu0 0.0
      %932 = vmatpush1.msra.mxu0 0.0
      %933 = vmatprep.subr.mxu0 0.0
      %934 = vmatpush1.msra.mxu0 0.0
      %935 = vmatprep.subr.mxu0 0.0
      %936 = vmatpush1.msra.mxu0 0.0
      %937 = vmatprep.subr.mxu0 0.0
      %938 = vmatpush1.msra.mxu0 0.0
      %939 = vmatprep.subr.mxu0 0.0
      %940 = vmatpush1.msra.mxu0 0.0
      %941 = vmatprep.subr.mxu0 0.0
      %942 = vmatpush1.msra.mxu0 0.0
      %943 = vmatprep.subr.mxu0 0.0
      %944 = vmatpush1.msra.mxu0 0.0
      %945 = vmatprep.subr.mxu0 0.0
      %946 = vmatpush1.msra.mxu0 0.0
      %947 = vmatprep.subr.mxu0 0.0
      %948 = vmatpush1.msra.mxu0 0.0
      %949 = vmatprep.subr.mxu0 0.0
      %950 = vmatpush1.msra.mxu0 0.0
      %951 = vmatprep.subr.mxu0 0.0
      %952 = vmatpush1.msra.mxu0 0.0
      %953 = vmatprep.subr.mxu0 0.0
      %954 = vmatpush1.msra.mxu0 0.0
      %955 = vmatprep.subr.mxu0 0.0
      %956 = vmatpush1.msra.mxu0 0.0
      %957 = vmatprep.subr.mxu0 0.0
      %958 = vmatpush1.msra.mxu0 0.0
      %959 = vmatprep.subr.mxu0 0.0
      %960 = vmatpush1.msra.mxu0 0.0
      %961 = vmatprep.subr.mxu0 0.0
      %962 = vmatpush1.msra.mxu0 0.0
      %963 = vmatprep.subr.mxu0 0.0
      %964 = vmatpush1.msra.mxu0 0.0
      %965 = vmatprep.subr.mxu0 0.0
      %966 = vmatpush1.msra.mxu0 0.0
      %967 = vmatprep.subr.mxu0 0.0
      %968 = vmatpush1.msra.mxu0 0.0
      %969 = vmatprep.subr.mxu0 0.0
      %970 = vmatpush1.msra.mxu0 0.0
      %971 = vmatprep.subr.mxu0 0.0
      %972 = vmatpush1.msra.mxu0 0.0
      %973 = vmatprep.mubr.f32.mxu0 0.0
      %974 = vmatmul.mubr.f32.gmra.mrb[0].mxu0 %v898
      %v975 = vpop.f32.mrb[0].mxu0
      %v976 = vadd.f32 0.0, %v975
      %v977 = vpop.f32.mrb[0].mxu0
      %978 = vmatprep.mubr.f32.mxu0 0.0
      %979 = vmatmul.mubr.f32.gmra.mrb[0].mxu0 %v901
      %v980 = vpop.f32.mrb[0].mxu0
      %v981 = vadd.f32 0.0, %v980
      %v982 = vpop.f32.mrb[0].mxu0
      %983 = vmatprep.mubr.f32.mxu0 0.0
      %984 = vmatmul.mubr.f32.gmra.mrb[0].mxu0 %v904
      %v985 = vpop.f32.mrb[0].mxu0
      %v986 = vadd.f32 0.0, %v985
      %v987 = vpop.f32.mrb[0].mxu0
      %988 = vmatprep.mubr.f32.mxu0 0.0
      %989 = vmatmul.mubr.f32.gmra.mrb[0].mxu0 %v907
      %v990 = vpop.f32.mrb[0].mxu0
      %v991 = vadd.f32 0.0, %v990
      %v992 = vpop.f32.mrb[0].mxu0
      %993 = vdwg.mxu0
      %v994 = vsel %vm678, %v976, 0.0
      %v995 = vsel %vm678, %v981, 0.0
      %v996 = vadd.f32 %v994, %v995
      %v997 = vsel %vm678, %v986, 0.0
      %v998 = vadd.f32 %v996, %v997
      %vm999 = vcmask 257024
      %v1000 = vsel %vm999, %v991, 0.0
      %v1001 = vadd.f32 %v998, %v1000
      %v1002 = vrot.slane %v1001, 4
      %v1003 = vadd.f32 %v1001, %v1002
      %v1004 = vrot.slane %v1003, 2
      %v1005 = vadd.f32 %v1003, %v1004
      %v1006 = vrot.slane %v1005, 1
      %v1007 = vadd.f32 %v1005, %v1006
      %v1008 = vrcp.pop 28.0
      %v1009 = vmul.f32 %v1007, %v1008
      %v1010 = vsub.f32 %v976, %v1009
      %v1011 = vsub.f32 %v981, %v1009
      %v1012 = vsub.f32 %v986, %v1009
      %v1013 = vsub.f32 %v991, %v1009
      %v1014 = vmul.f32 %v1010, %v1010
      %v1015 = vmul.f32 %v1011, %v1011
      %v1016 = vmul.f32 %v1012, %v1012
      %v1017 = vmul.f32 %v1013, %v1013
      %v1018 = vsel %vm678, %v1014, 0.0
      %v1019 = vsel %vm678, %v1015, 0.0
      %v1020 = vadd.f32 %v1018, %v1019
      %v1021 = vsel %vm678, %v1016, 0.0
      %v1022 = vadd.f32 %v1020, %v1021
      %v1023 = vsel %vm999, %v1017, 0.0
      %v1024 = vadd.f32 %v1022, %v1023
      %v1025 = vrot.slane %v1024, 4
      %v1026 = vadd.f32 %v1024, %v1025
      %v1027 = vrot.slane %v1026, 2
      %v1028 = vadd.f32 %v1026, %v1027
      %v1029 = vrot.slane %v1028, 1
      %v1030 = vadd.f32 %v1028, %v1029
      %v1031 = vmul.f32 %v1030, %v1008
      %v1032 = vadd.f32 %v1031, 1e-05
      %v1033 = vrsqrt.pop %v1032
      %v1034 = vmul.f32 %v1010, %v1033
      %v1035 = vmul.f32 %v1011, %v1033
      %v1036 = vmul.f32 %v1012, %v1033
      %v1037 = vmul.f32 %v1013, %v1033
      %v1038 = vld [vmem:[%s6] sm:$0x1]
      %v1040 = vlaneseq
      %v1041 = vshrl.u32 %v1040, 7
      %v1042 = vsub.s32 0, %v1041
      %v1043 = vrot.slane %v1038, %v1042
      %v1045 = vmul.f32 %v1034, %v1043
      %v1046 = vmul.f32 %v1035, %v1043
      %v1047 = vmul.f32 %v1036, %v1043
      %v1048 = vmul.f32 %v1037, %v1043
      %v1049 = vld [vmem:[%s7] sm:$0x1]
      %v1051 = vlaneseq
      %v1052 = vshrl.u32 %v1051, 7
      %v1053 = vsub.s32 0, %v1052
      %v1054 = vrot.slane %v1049, %v1053
      %v1056 = vadd.f32 %v1045, %v1054
      %v1057 = vadd.f32 %v1046, %v1054
      %v1058 = vadd.f32 %v1047, %v1054
      %v1059 = vadd.f32 %v1048, %v1054
      %v1060 = vxor.u32 %v1056, 2147483648
      %v1061 = vxor.u32 %v1057, 2147483648
      %v1062 = vxor.u32 %v1058, 2147483648
      %v1063 = vxor.u32 %v1059, 2147483648
      %v1064 = vmul.f32 %v1060, 1.442695
      %v1065 = vpow.pop %v1064
      %v1066 = vmul.f32 %v1061, 1.442695
      %v1067 = vpow.pop %v1066
      %v1068 = vmul.f32 %v1062, 1.442695
      %v1069 = vpow.pop %v1068
      %v1070 = vmul.f32 %v1063, 1.442695
      %v1071 = vpow.pop %v1070
      %v1072 = vadd.f32 %v1065, 1.0
      %v1073 = vadd.f32 %v1067, 1.0
      %v1074 = vadd.f32 %v1069, 1.0
      %v1075 = vadd.f32 %v1071, 1.0
      %v1076 = vrcp.pop %v1072
      %v1077 = vmul.f32 1.0, %v1076
      %v1078 = vrcp.pop %v1073
      %v1079 = vmul.f32 1.0, %v1078
      %v1080 = vrcp.pop %v1074
      %v1081 = vmul.f32 1.0, %v1080
      %v1082 = vrcp.pop %v1075
      %v1083 = vmul.f32 1.0, %v1082
      %v1084 = vmul.f32 %v1077, 12.0
      %v1085 = vmul.f32 %v1079, 12.0
      %v1086 = vmul.f32 %v1081, 12.0
      %v1087 = vmul.f32 %v1083, 12.0
      %v1088 = vmul.f32 %v1084, 1.442695
      %v1089 = vpow.pop %v1088
      %v1090 = vmul.f32 %v1085, 1.442695
      %v1091 = vpow.pop %v1090
      %v1092 = vmul.f32 %v1086, 1.442695
      %v1093 = vpow.pop %v1092
      %v1094 = vmul.f32 %v1087, 1.442695
      %v1095 = vpow.pop %v1094
      %v1096 = vmul.f32 %v823, %v1089
      %v1097 = vmul.f32 %v824, %v1091
      %v1098 = vmul.f32 %v825, %v1093
      %v1099 = vmul.f32 %v826, %v1095
      %1100 = vst.msk [vmem:[#allocation2] sm:$0xff] %vm678, %v1096
      %1101 = vst.msk [vmem:[#allocation2 + $0x8] sm:$0xff] %vm678, %v1097
      %1102 = vst.msk [vmem:[#allocation2 + $0x10] sm:$0xff] %vm678, %v1098
      %1103 = vst.msk [vmem:[#allocation2 + $0x18] sm:$0xf] %vm999, %v1099
      %1104 = vst.msk [vmem:[#allocation3] sm:$0xff] %vm678, %v1089
      %1105 = vst.msk [vmem:[#allocation3 + $0x8] sm:$0xff] %vm678, %v1091
      %1106 = vst.msk [vmem:[#allocation3 + $0x10] sm:$0xff] %vm678, %v1093
      %1107 = vst.msk [vmem:[#allocation3 + $0x18] sm:$0xf] %vm999, %v1095
      %v1108 = vld [vmem:[#allocation2] ss:$2 sm:$0xff]
      %s1109 = scalar_lea.vmem [#allocation2], 16
      %v1110 = vld [vmem:[%s1109] ss:$2 sm:$0x3f]
      %s1111 = scalar_lea.vmem [#allocation2], 1
      %v1112 = vld [vmem:[%s1111] ss:$2 sm:$0xff]
      %s1113 = scalar_lea.vmem [#allocation2], 17
      %v1114 = vld [vmem:[%s1113] ss:$2 sm:$0x3f]
      %v1115 = vadd.f32 %v1108, %v1112
      %v1116 = vadd.f32 %v1110, %v1114
      %v1117 = vld [vmem:[#allocation3] ss:$2 sm:$0xff]
      %s1118 = scalar_lea.vmem [#allocation3], 16
      %v1119 = vld [vmem:[%s1118] ss:$2 sm:$0x3f]
      %s1120 = scalar_lea.vmem [#allocation3], 1
      %v1121 = vld [vmem:[%s1120] ss:$2 sm:$0xff]
      %s1122 = scalar_lea.vmem [#allocation3], 17
      %v1123 = vld [vmem:[%s1122] ss:$2 sm:$0x3f]
      %v1124 = vadd.f32 %v1117, %v1121
      %v1125 = vadd.f32 %v1119, %v1123
      %v1126 = vrcp.pop %v1124
      %v1127 = vrcp.pop %v1125
      %v1128 = vmul.f32 %v1115, %v1126
      %v1129 = vmul.f32 %v1116, %v1127
      %v1132 = vrot.slane %v1128, 1
      %v1133 = vrot.slane %v1129, 1
      %v1134 = vsel %vm593, %v1132, %v1133
      %1135 = vrot.lane.b32.xlu0 %v1134, 32
      %v1136 = vpop.permute.xlu0 %1135
      %1137 = vrot.lane.b32.xlu0 %v1133, 32
      %v1138 = vpop.permute.xlu0 %1137
      %v1141 = vrot.slane %v1128, 2
      %v1142 = vrot.slane %v1129, 2
      %v1143 = vsel %vm613, %v1141, %v1142
      %1144 = vrot.lane.b32.xlu0 %v1143, 64
      %v1145 = vpop.permute.xlu0 %1144
      %1146 = vrot.lane.b32.xlu0 %v1142, 64
      %v1147 = vpop.permute.xlu0 %1146
      %v1150 = vrot.slane %v1128, 3
      %v1151 = vrot.slane %v1129, 3
      %v1152 = vsel %vm633, %v1150, %v1151
      %1153 = vrot.lane.b32.xlu0 %v1152, 96
      %v1154 = vpop.permute.xlu0 %1153
      %1155 = vrot.lane.b32.xlu0 %v1151, 96
      %v1156 = vpop.permute.xlu0 %1155
      %v1159 = vrot.slane %v1128, 4
      %v1160 = vrot.slane %v1129, 4
      %v1161 = vsel %vm653, %v1159, %v1160
      %v1162 = vsel %vm678, %v1128, %v1136
      %v1163 = vsel %vm678, %v1129, %v1138
      %v1164 = vsel %vm688, %v1162, %v1145
      %v1165 = vsel %vm688, %v1163, %v1147
      %vm1166 = vcmask 785408
      %v1167 = vsel %vm1166, %v1164, %v1154
      %v1168 = vsel %vm1166, %v1165, %v1156
      %v1169 = vld [vmem:[%s8] sm:$0xff]
      %v1170 = vld [vmem:[%s8 + $0x8] sm:$0xff]
      %v1171 = vld [vmem:[%s8 + $0x10] sm:$0xff]
      %v1172 = vld [vmem:[%s8 + $0x18] sm:$0xff]
      %v1173 = vld [vmem:[%s8 + $0x20] sm:$0xff]
      %v1174 = vld [vmem:[%s8 + $0x28] sm:$0xff]
      %v1175 = vld [vmem:[%s8 + $0x30] sm:$0xff]
      %v1176 = vld [vmem:[%s8 + $0x38] sm:$0xff]
      %v1177 = vld [vmem:[%s8 + $0x40] sm:$0xff]
      %v1178 = vld [vmem:[%s8 + $0x48] sm:$0xff]
      %v1179 = vld [vmem:[%s8 + $0x50] sm:$0xff]
      %v1180 = vld [vmem:[%s8 + $0x58] sm:$0xff]
      %v1181 = vld [vmem:[%s8 + $0x60] sm:$0xff]
      %v1182 = vld [vmem:[%s8 + $0x68] sm:$0xff]
      %v1183 = vld [vmem:[%s8 + $0x70] sm:$0xff]
      %v1184 = vld [vmem:[%s8 + $0x78] sm:$0xff]
      %v1185 = vld [vmem:[%s8 + $0x80] sm:$0xff]
      %v1186 = vld [vmem:[%s8 + $0x88] sm:$0xff]
      %v1187 = vld [vmem:[%s8 + $0x90] sm:$0xff]
      %v1188 = vld [vmem:[%s8 + $0x98] sm:$0xff]
      %v1189 = vsel %vm678, %v1161, 0
      %v1191 = vsel %vm678, %v1160, 0
      %1193 = vmatprep.subr.mxu0 0.0
      %1194 = vmatpush1.msra.mxu0 %v1169
      %1195 = vmatprep.subr.mxu0 0.0
      %1196 = vmatpush1.msra.mxu0 %v1170
      %1197 = vmatprep.subr.mxu0 0.0
      %1198 = vmatpush1.msra.mxu0 %v1171
      %1199 = vmatprep.subr.mxu0 0.0
      %1200 = vmatpush1.msra.mxu0 %v1172
      %1201 = vmatprep.subr.mxu0 0.0
      %1202 = vmatpush1.msra.mxu0 %v1173
      %1203 = vmatprep.subr.mxu0 0.0
      %1204 = vmatpush1.msra.mxu0 %v1174
      %1205 = vmatprep.subr.mxu0 0.0
      %1206 = vmatpush1.msra.mxu0 %v1175
      %1207 = vmatprep.subr.mxu0 0.0
      %1208 = vmatpush1.msra.mxu0 %v1176
      %1209 = vmatprep.subr.mxu0 0.0
      %1210 = vmatpush1.msra.mxu0 %v1177
      %1211 = vmatprep.subr.mxu0 0.0
      %1212 = vmatpush1.msra.mxu0 %v1178
      %1213 = vmatprep.subr.mxu0 0.0
      %1214 = vmatpush1.msra.mxu0 %v1179
      %1215 = vmatprep.subr.mxu0 0.0
      %1216 = vmatpush1.msra.mxu0 %v1180
      %1217 = vmatprep.subr.mxu0 0.0
      %1218 = vmatpush1.msra.mxu0 %v1181
      %1219 = vmatprep.subr.mxu0 0.0
      %1220 = vmatpush1.msra.mxu0 %v1182
      %1221 = vmatprep.subr.mxu0 0.0
      %1222 = vmatpush1.msra.mxu0 %v1183
      %1223 = vmatprep.subr.mxu0 0.0
      %1224 = vmatpush1.msra.mxu0 %v1184
      %1225 = vmatprep.subr.mxu0 0.0
      %1226 = vmatpush1.msra.mxu0 %v1185
      %1227 = vmatprep.subr.mxu0 0.0
      %1228 = vmatpush1.msra.mxu0 %v1186
      %1229 = vmatprep.subr.mxu0 0.0
      %1230 = vmatpush1.msra.mxu0 %v1187
      %1231 = vmatprep.subr.mxu0 0.0
      %1232 = vmatpush1.msra.mxu0 %v1188
      %1233 = vmatprep.subr.mxu0 0.0
      %1234 = vmatpush1.msra.mxu0 0.0
      %1235 = vmatprep.subr.mxu0 0.0
      %1236 = vmatpush1.msra.mxu0 0.0
      %1237 = vmatprep.subr.mxu0 0.0
      %1238 = vmatpush1.msra.mxu0 0.0
      %1239 = vmatprep.subr.mxu0 0.0
      %1240 = vmatpush1.msra.mxu0 0.0
      %1241 = vmatprep.subr.mxu0 0.0
      %1242 = vmatpush1.msra.mxu0 0.0
      %1243 = vmatprep.subr.mxu0 0.0
      %1244 = vmatpush1.msra.mxu0 0.0
      %1245 = vmatprep.subr.mxu0 0.0
      %1246 = vmatpush1.msra.mxu0 0.0
      %1247 = vmatprep.subr.mxu0 0.0
      %1248 = vmatpush1.msra.mxu0 0.0
      %1249 = vmatprep.subr.mxu0 0.0
      %1250 = vmatpush1.msra.mxu0 0.0
      %1251 = vmatprep.subr.mxu0 0.0
      %1252 = vmatpush1.msra.mxu0 0.0
      %1253 = vmatprep.subr.mxu0 0.0
      %1254 = vmatpush1.msra.mxu0 0.0
      %1255 = vmatprep.subr.mxu0 0.0
      %1256 = vmatpush1.msra.mxu0 0.0
      %1257 = vmatprep.mubr.f32.mxu0 %v1189
      %1258 = vmatmul.mubr.f32.gmra.mrb[0].mxu0 %v1167
      %v1259 = vpop.f32.mrb[0].mxu0
      %v1260 = vadd.f32 0.0, %v1259
      %v1261 = vpop.f32.mrb[0].mxu0
      %1262 = vmatprep.mubr.f32.mxu0 %v1191
      %1263 = vmatmul.mubr.f32.gmra.mrb[0].mxu0 %v1168
      %v1264 = vpop.f32.mrb[0].mxu0
      %v1265 = vadd.f32 0.0, %v1264
      %v1266 = vpop.f32.mrb[0].mxu0
      %1267 = vdwg.mxu0
      %v1268 = vld [vmem:[%s9] sm:$0x1]
      %v1270 = vlaneseq
      %v1271 = vshrl.u32 %v1270, 7
      %v1272 = vsub.s32 0, %v1271
      %v1273 = vrot.slane %v1268, %v1272
      %v1275 = vmul.f32 %v1260, %v1273
      %v1276 = vmul.f32 %v1265, %v1273
      %v1277 = vld [vmem:[%s10] sm:$0x1]
      %v1279 = vlaneseq
      %v1280 = vshrl.u32 %v1279, 7
      %v1281 = vsub.s32 0, %v1280
      %v1282 = vrot.slane %v1277, %v1281
      %v1284 = vadd.f32 %v1275, %v1282
      %v1285 = vadd.f32 %v1276, %v1282
      %v1286 = vmax.f32 %v1284, 0.0
      %v1287 = vmax.f32 %v1285, 0.0
      %v1288 = vld [vmem:[%s11] sm:$0x7]
      %v1291 = vrot.slane %v1286, 7
      %v1292 = vrot.slane %v1287, 7
      %v1293 = vsel %vm832, %v1291, %v1292
      %v1296 = vsel %vm832, 0.0, %v1291
      %vm1297 = vcmask 1042432
      %v1298 = vsel %vm1297, %v1293, 0.0
      %v1299 = vlaneseq
      %v1300 = vshrl.u32 %v1299, 7
      %v1301 = vsub.s32 0, %v1300
      %v1302 = vrot.slane %v1288, %v1301
      %v1303 = vmul.f32 %v1296, %v1302
      %v1304 = vmul.f32 %v1298, %v1302
      %v1305 = vlaneseq
      %v1306 = vshrl.u32 %v1305, 7
      %v1307 = vsub.s32 1, %v1306
      %v1308 = vrot.slane %v1288, %v1307
      %v1309 = vmul.f32 %v1286, %v1308
      %v1310 = vmul.f32 %v1287, %v1308
      %v1311 = vadd.f32 %v1303, %v1309
      %v1312 = vadd.f32 %v1304, %v1310
      %v1313 = vlaneseq
      %v1314 = vshrl.u32 %v1313, 7
      %v1315 = vsub.s32 2, %v1314
      %v1316 = vrot.slane %v1288, %v1315
      %v1317 = vmul.f32 %v1296, %v1316
      %v1318 = vmul.f32 %v1298, %v1316
      %v1321 = vrot.slane %v1317, 2
      %v1322 = vrot.slane %v1318, 2
      %v1323 = vsel %vm613, %v1321, %v1322
      %v1326 = vadd.f32 %v1311, %v1323
      %v1327 = vadd.f32 %v1312, %v1322
      %v1328 = vld [vmem:[%s12] sm:$0xff]
      %v1329 = vld [vmem:[%s12 + $0x8] sm:$0xff]
      %v1330 = vld [vmem:[%s12 + $0x10] sm:$0xff]
      %v1331 = vld [vmem:[%s12 + $0x18] sm:$0xff]
      %v1333 = vsel %vm678, %v1326, 0
      %v1336 = vsel %vm678, %v1327, 0
      %1338 = vmatprep.subr.mxu0 0.0
      %1339 = vmatpush1.msra.mxu0 %v1328
      %1340 = vmatprep.subr.mxu0 0.0
      %1341 = vmatpush1.msra.mxu0 %v1329
      %1342 = vmatprep.subr.mxu0 0.0
      %1343 = vmatpush1.msra.mxu0 %v1330
      %1344 = vmatprep.subr.mxu0 0.0
      %1345 = vmatpush1.msra.mxu0 %v1331
      %1346 = vmatprep.subr.mxu0 0.0
      %1347 = vmatpush1.msra.mxu0 0.0
      %1348 = vmatprep.subr.mxu0 0.0
      %1349 = vmatpush1.msra.mxu0 0.0
      %1350 = vmatprep.subr.mxu0 0.0
      %1351 = vmatpush1.msra.mxu0 0.0
      %1352 = vmatprep.subr.mxu0 0.0
      %1353 = vmatpush1.msra.mxu0 0.0
      %1354 = vmatprep.subr.mxu0 0.0
      %1355 = vmatpush1.msra.mxu0 0.0
      %1356 = vmatprep.subr.mxu0 0.0
      %1357 = vmatpush1.msra.mxu0 0.0
      %1358 = vmatprep.subr.mxu0 0.0
      %1359 = vmatpush1.msra.mxu0 0.0
      %1360 = vmatprep.subr.mxu0 0.0
      %1361 = vmatpush1.msra.mxu0 0.0
      %1362 = vmatprep.subr.mxu0 0.0
      %1363 = vmatpush1.msra.mxu0 0.0
      %1364 = vmatprep.subr.mxu0 0.0
      %1365 = vmatpush1.msra.mxu0 0.0
      %1366 = vmatprep.subr.mxu0 0.0
      %1367 = vmatpush1.msra.mxu0 0.0
      %1368 = vmatprep.subr.mxu0 0.0
      %1369 = vmatpush1.msra.mxu0 0.0
      %1370 = vmatprep.subr.mxu0 0.0
      %1371 = vmatpush1.msra.mxu0 0.0
      %1372 = vmatprep.subr.mxu0 0.0
      %1373 = vmatpush1.msra.mxu0 0.0
      %1374 = vmatprep.subr.mxu0 0.0
      %1375 = vmatpush1.msra.mxu0 0.0
      %1376 = vmatprep.subr.mxu0 0.0
      %1377 = vmatpush1.msra.mxu0 0.0
      %1378 = vmatprep.subr.mxu0 0.0
      %1379 = vmatpush1.msra.mxu0 0.0
      %1380 = vmatprep.subr.mxu0 0.0
      %1381 = vmatpush1.msra.mxu0 0.0
      %1382 = vmatprep.subr.mxu0 0.0
      %1383 = vmatpush1.msra.mxu0 0.0
      %1384 = vmatprep.subr.mxu0 0.0
      %1385 = vmatpush1.msra.mxu0 0.0
      %1386 = vmatprep.subr.mxu0 0.0
      %1387 = vmatpush1.msra.mxu0 0.0
      %1388 = vmatprep.subr.mxu0 0.0
      %1389 = vmatpush1.msra.mxu0 0.0
      %1390 = vmatprep.subr.mxu0 0.0
      %1391 = vmatpush1.msra.mxu0 0.0
      %1392 = vmatprep.subr.mxu0 0.0
      %1393 = vmatpush1.msra.mxu0 0.0
      %1394 = vmatprep.subr.mxu0 0.0
      %1395 = vmatpush1.msra.mxu0 0.0
      %1396 = vmatprep.subr.mxu0 0.0
      %1397 = vmatpush1.msra.mxu0 0.0
      %1398 = vmatprep.subr.mxu0 0.0
      %1399 = vmatpush1.msra.mxu0 0.0
      %1400 = vmatprep.subr.mxu0 0.0
      %1401 = vmatpush1.msra.mxu0 0.0
      %1402 = vmatprep.mubr.f32.mxu0 0.0
      %1403 = vmatmul.mubr.f32.gmra.mrb[0].mxu0 %v1333
      %v1404 = vpop.f32.mrb[0].mxu0
      %v1405 = vadd.f32 0.0, %v1404
      %v1406 = vpop.f32.mrb[0].mxu0
      %1407 = vmatprep.mubr.f32.mxu0 0.0
      %1408 = vmatmul.mubr.f32.gmra.mrb[0].mxu0 %v1336
      %v1409 = vpop.f32.mrb[0].mxu0
      %v1410 = vadd.f32 0.0, %v1409
      %v1411 = vpop.f32.mrb[0].mxu0
      %1412 = vdwg.mxu0
      %v1413 = vsel %vm678, %v1405, 0.0
      %vm1414 = vcmask 254976
      %v1415 = vsel %vm1414, %v1410, 0.0
      %v1416 = vadd.f32 %v1413, %v1415
      %v1417 = vrot.slane %v1416, 4
      %v1418 = vadd.f32 %v1416, %v1417
      %v1419 = vrot.slane %v1418, 2
      %v1420 = vadd.f32 %v1418, %v1419
      %v1421 = vrot.slane %v1420, 1
      %v1422 = vadd.f32 %v1420, %v1421
      %v1423 = vrcp.pop 10.0
      %v1424 = vmul.f32 %v1422, %v1423
      %v1425 = vsub.f32 %v1405, %v1424
      %v1426 = vsub.f32 %v1410, %v1424
      %v1427 = vmul.f32 %v1425, %v1425
      %v1428 = vmul.f32 %v1426, %v1426
      %v1429 = vsel %vm678, %v1427, 0.0
      %v1430 = vsel %vm1414, %v1428, 0.0
      %v1431 = vadd.f32 %v1429, %v1430
      %v1432 = vrot.slane %v1431, 4
      %v1433 = vadd.f32 %v1431, %v1432
      %v1434 = vrot.slane %v1433, 2
      %v1435 = vadd.f32 %v1433, %v1434
      %v1436 = vrot.slane %v1435, 1
      %v1437 = vadd.f32 %v1435, %v1436
      %v1438 = vmul.f32 %v1437, %v1423
      %v1439 = vadd.f32 %v1438, 1e-05
      %v1440 = vrsqrt.pop %v1439
      %v1441 = vmul.f32 %v1425, %v1440
      %v1442 = vmul.f32 %v1426, %v1440
      %v1443 = vld [vmem:[%s13] sm:$0x1]
      %v1445 = vlaneseq
      %v1446 = vshrl.u32 %v1445, 7
      %v1447 = vsub.s32 0, %v1446
      %v1448 = vrot.slane %v1443, %v1447
      %v1450 = vmul.f32 %v1441, %v1448
      %v1451 = vmul.f32 %v1442, %v1448
      %v1452 = vld [vmem:[%s14] sm:$0x1]
      %v1454 = vlaneseq
      %v1455 = vshrl.u32 %v1454, 7
      %v1456 = vsub.s32 0, %v1455
      %v1457 = vrot.slane %v1452, %v1456
      %v1459 = vadd.f32 %v1450, %v1457
      %v1460 = vadd.f32 %v1451, %v1457
      %v1461 = vxor.u32 %v1459, 2147483648
      %v1462 = vxor.u32 %v1460, 2147483648
      %v1463 = vmul.f32 %v1461, 1.442695
      %v1464 = vpow.pop %v1463
      %v1465 = vmul.f32 %v1462, 1.442695
      %v1466 = vpow.pop %v1465
      %v1467 = vadd.f32 %v1464, 1.0
      %v1468 = vadd.f32 %v1466, 1.0
      %v1469 = vrcp.pop %v1467
      %v1470 = vmul.f32 1.0, %v1469
      %v1471 = vrcp.pop %v1468
      %v1472 = vmul.f32 1.0, %v1471
      %v1473 = vmul.f32 %v1470, 12.0
      %v1474 = vmul.f32 %v1472, 12.0
      %v1475 = vmul.f32 %v1473, 1.442695
      %v1476 = vpow.pop %v1475
      %v1477 = vmul.f32 %v1474, 1.442695
      %v1478 = vpow.pop %v1477
      %v1479 = vmul.f32 %v1286, %v1476
      %v1480 = vmul.f32 %v1287, %v1478
      %1481 = vst.msk [vmem:[#allocation2] sm:$0xff] %vm678, %v1479
      %1482 = vst.msk [vmem:[#allocation2 + $0x8] sm:$0x3] %vm1414, %v1480
      %1483 = vst.msk [vmem:[#allocation3] sm:$0xff] %vm678, %v1476
      %1484 = vst.msk [vmem:[#allocation3 + $0x8] sm:$0x3] %vm1414, %v1478
      %v1485 = vld [vmem:[#allocation2] ss:$2 sm:$0x1f]
      %v1486 = vld [vmem:[%s1111] ss:$2 sm:$0x1f]
      %v1487 = vadd.f32 %v1485, %v1486
      %v1488 = vld [vmem:[#allocation3] ss:$2 sm:$0x1f]
      %v1489 = vld [vmem:[%s1120] ss:$2 sm:$0x1f]
      %v1490 = vadd.f32 %v1488, %v1489
      %v1491 = vrcp.pop %v1490
      %v1492 = vmul.f32 %v1487, %v1491
      %vm1493 = vcmask 258048
      %1494 = vst.msk [vmem:[%s580] sm:$0x1f] %vm1493, %v1492
      %v1495 = vld [vmem:[%s15] sm:$0xff]
      %v1496 = vld [vmem:[%s15 + $0x8] sm:$0xff]
      %v1497 = vld [vmem:[%s15 + $0x10] sm:$0xff]
      %v1498 = vld [vmem:[%s15 + $0x18] sm:$0xff]
      %v1499 = vld [vmem:[%s16] sm:$0x1]
      %v1501 = vlaneseq
      %v1502 = vshrl.u32 %v1501, 7
      %v1503 = vsub.s32 0, %v1502
      %v1504 = vrot.slane %v1499, %v1503
      %v1507 = vsel %vm678, %v1492, 0
      %1509 = vmatprep.subr.mxu0 0.0
      %1510 = vmatpush1.msra.mxu0 %v1495
      %1511 = vmatprep.subr.mxu0 0.0
      %1512 = vmatpush1.msra.mxu0 %v1496
      %1513 = vmatprep.subr.mxu0 0.0
      %1514 = vmatpush1.msra.mxu0 %v1497
      %1515 = vmatprep.subr.mxu0 0.0
      %1516 = vmatpush1.msra.mxu0 %v1498
      %1517 = vmatprep.subr.mxu0 0.0
      %1518 = vmatpush1.msra.mxu0 0.0
      %1519 = vmatprep.subr.mxu0 0.0
      %1520 = vmatpush1.msra.mxu0 0.0
      %1521 = vmatprep.subr.mxu0 0.0
      %1522 = vmatpush1.msra.mxu0 0.0
      %1523 = vmatprep.subr.mxu0 0.0
      %1524 = vmatpush1.msra.mxu0 0.0
      %1525 = vmatprep.subr.mxu0 0.0
      %1526 = vmatpush1.msra.mxu0 0.0
      %1527 = vmatprep.subr.mxu0 0.0
      %1528 = vmatpush1.msra.mxu0 0.0
      %1529 = vmatprep.subr.mxu0 0.0
      %1530 = vmatpush1.msra.mxu0 0.0
      %1531 = vmatprep.subr.mxu0 0.0
      %1532 = vmatpush1.msra.mxu0 0.0
      %1533 = vmatprep.subr.mxu0 0.0
      %1534 = vmatpush1.msra.mxu0 0.0
      %1535 = vmatprep.subr.mxu0 0.0
      %1536 = vmatpush1.msra.mxu0 0.0
      %1537 = vmatprep.subr.mxu0 0.0
      %1538 = vmatpush1.msra.mxu0 0.0
      %1539 = vmatprep.subr.mxu0 0.0
      %1540 = vmatpush1.msra.mxu0 0.0
      %1541 = vmatprep.subr.mxu0 0.0
      %1542 = vmatpush1.msra.mxu0 0.0
      %1543 = vmatprep.subr.mxu0 0.0
      %1544 = vmatpush1.msra.mxu0 0.0
      %1545 = vmatprep.subr.mxu0 0.0
      %1546 = vmatpush1.msra.mxu0 0.0
      %1547 = vmatprep.subr.mxu0 0.0
      %1548 = vmatpush1.msra.mxu0 0.0
      %1549 = vmatprep.subr.mxu0 0.0
      %1550 = vmatpush1.msra.mxu0 0.0
      %1551 = vmatprep.subr.mxu0 0.0
      %1552 = vmatpush1.msra.mxu0 0.0
      %1553 = vmatprep.subr.mxu0 0.0
      %1554 = vmatpush1.msra.mxu0 0.0
      %1555 = vmatprep.subr.mxu0 0.0
      %1556 = vmatpush1.msra.mxu0 0.0
      %1557 = vmatprep.subr.mxu0 0.0
      %1558 = vmatpush1.msra.mxu0 0.0
      %1559 = vmatprep.subr.mxu0 0.0
      %1560 = vmatpush1.msra.mxu0 0.0
      %1561 = vmatprep.subr.mxu0 0.0
      %1562 = vmatpush1.msra.mxu0 0.0
      %1563 = vmatprep.subr.mxu0 0.0
      %1564 = vmatpush1.msra.mxu0 0.0
      %1565 = vmatprep.subr.mxu0 0.0
      %1566 = vmatpush1.msra.mxu0 0.0
      %1567 = vmatprep.subr.mxu0 0.0
      %1568 = vmatpush1.msra.mxu0 0.0
      %1569 = vmatprep.subr.mxu0 0.0
      %1570 = vmatpush1.msra.mxu0 0.0
      %1571 = vmatprep.subr.mxu0 0.0
      %1572 = vmatpush1.msra.mxu0 0.0
      %1573 = vmatprep.mubr.f32.mxu0 0.0
      %1574 = vmatmul.mubr.f32.gmra.mrb[0].mxu0 %v1507
      %v1575 = vpop.f32.mrb[0].mxu0
      %v1576 = vadd.f32 %v1504, %v1575
      %v1577 = vpop.f32.mrb[0].mxu0
      %1578 = vdwg.mxu0
      %vm1579 = vcmask 77824
      %1580 = vst.msk [vmem:[%s584] sm:$0x1f] %vm1579, %v1576
      %p1581 = scmp.lt.s32.totalorder %s30, 1
      %s1582 = scalar_select %p1581, %s30, 1
      %s1583 = smul.addr %s1582, 8
      %s1584 = scalar_lea.vmem %s17, %s1583
      %p1585 = scmp.lt.s32.totalorder %s30, 1
      %s1586 = scalar_select %p1585, %s30, 1
      %s1587 = smul.addr %s1586, 8
      %s1588 = scalar_lea.vmem %s18, %s1587
      // Predicated region
      $region89: #{tpu_custom_call.1} parent=87 // pred_check
        %p1589 = pneg %p410
      $region90: #{tpu_custom_call.1} parent=87 // pred_check_branch
        %1591 = sbr.rel (%p1589) target = $region92
      $region91: #{tpu_custom_call.1} parent=87 // pred_region
        _
      $region92: #{tpu_custom_call.1} parent=87 // pred_fallthru
        _
      // Predicated region
      $region93: #{tpu_custom_call.1} parent=87 // pred_check
        %p1592 = pneg %p436
      $region94: #{tpu_custom_call.1} parent=87 // pred_check_branch
        %1594 = sbr.rel (%p1592) target = $region96
      $region95: #{tpu_custom_call.1} parent=87 // pred_region
        _
      $region96: #{tpu_custom_call.1} parent=87 // pred_fallthru
        _
    $region88: #{tpu_custom_call.1} parent=5 // pred_fallthru
      _
    %p1595 = scmp.le.s32.totalorder 2, %s25
    // Predicated region
    $region97: #{tpu_custom_call.1} parent=5 // pred_check
      %p1596 = pneg %p1595
    $region98: #{tpu_custom_call.1} parent=5 // pred_check_branch
      %1598 = sbr.rel (%p1596) target = $region100
    $region99: #{tpu_custom_call.1} parent=5 // pred_region
      %s1599 = ssub.s32 %s25, 2
      // Predicated region
      $region101: #{tpu_custom_call.1} parent=99 // pred_check
        %p1600 = pneg %p416
      $region102: #{tpu_custom_call.1} parent=99 // pred_check_branch
        %1602 = sbr.rel (%p1600) target = $region104
      $region103: #{tpu_custom_call.1} parent=99 // pred_region
        %p1603 = scmp.lt.s32.totalorder %s31, 1
        %s1604 = scalar_select %p1603, %s31, 1
        %s1605 = smul.addr %s1604, 8
        %s1606 = scalar_lea.vmem %s17, %s1605
      $region104: #{tpu_custom_call.1} parent=99 // pred_fallthru
        _
      // Predicated region
      $region105: #{tpu_custom_call.1} parent=99 // pred_check
        %p1607 = pneg %p442
      $region106: #{tpu_custom_call.1} parent=99 // pred_check_branch
        %1609 = sbr.rel (%p1607) target = $region108
      $region107: #{tpu_custom_call.1} parent=99 // pred_region
        %p1610 = scmp.lt.s32.totalorder %s31, 1
        %s1611 = scalar_select %p1610, %s31, 1
        %s1612 = smul.addr %s1611, 8
        %s1613 = scalar_lea.vmem %s18, %s1612
      $region108: #{tpu_custom_call.1} parent=99 // pred_fallthru
        _
    $region100: #{tpu_custom_call.1} parent=5 // pred_fallthru
      _
  $region6: #{tpu_custom_call.1} parent=0 // loop_footer
    %s29 = sadd.s32 1, %s25
  $region7: #{tpu_custom_call.1} parent=0 // loop_footer_branch
    %24 = sbr.rel target = $region3
  $region8: #{tpu_custom_call.1} parent=0 // loop_exit
    _

</llo_original>
